<compile_context>
chip_gen: v5e
topology: v5e:2x2
jax: 0.10.0
libtpu: 0.0.40
codegen_flags: <defaults>
</compile_context>

<pallas_src>
import jax
import jax.numpy as jnp
from jax.experimental import pallas as pl
from jax.experimental.pallas import tpu as pltpu


# ----------------------------------------------------------------------------
# Fused Pallas kernel: LSTM stack + linear head + sigmoid
# ----------------------------------------------------------------------------
def _make_fused_forward_kernel(num_layers, B, T, H, O_pad):
    """Build the fused forward kernel body (all shapes static at trace time)."""
    f32 = jnp.float32

    def kernel(*refs):
        # inputs : x2d (B*T, D), [wih_t (D_l,4H), whh_t (H,4H), b (1,4H)] * L,
        #          w_out_pad (H, O_pad), b_out_pad (1, O_pad)
        # outputs: out_pad (B*T, O_pad), h_n (L, B, H), c_n (L, B, H)
        x_ref = refs[0]
        w_out_ref = refs[1 + 3 * num_layers]
        b_out_ref = refs[2 + 3 * num_layers]
        out_ref, hn_ref, cn_ref = refs[3 + 3 * num_layers:]

        inp = x_ref[...].astype(f32)                      # (B*T, D), row = b*T + t

        for layer in range(num_layers):
            wih_t = refs[1 + 3 * layer][...]              # (D_l, 4H)
            whh_t = refs[2 + 3 * layer][...]              # (H, 4H)
            bias = refs[3 + 3 * layer][...]               # (1, 4H) = b_ih + b_hh

            # Hoisted non-recurrent input projection (+ bias) for ALL timesteps:
            # one (B*T, D_l) @ (D_l, 4H) matmul instead of T tiny per-step matmuls.
            gates_x = jnp.dot(inp, wih_t,
                              preferred_element_type=f32) + bias      # (B*T, 4H)
            gates_x = gates_x.reshape(B, T, 4 * H)        # [b, t, :] == row b*T + t

            h = jnp.zeros((B, H), f32)
            c = jnp.zeros((B, H), f32)
            h_steps = []
            # Sequential recurrence, fully unrolled at trace time (static indices).
            for t in range(T):
                gates = gates_x[:, t, :] + jnp.dot(
                    h, whh_t, preferred_element_type=f32)             # (B, 4H)
                # Two full-tile (one-vreg-wide) EUP transcendentals, then lane slices.
                sig_all = jax.nn.sigmoid(gates)
                tanh_all = jnp.tanh(gates)
                i_g = sig_all[:, 0 * H:1 * H]
                f_g = sig_all[:, 1 * H:2 * H]
                g_g = tanh_all[:, 2 * H:3 * H]
                o_g = sig_all[:, 3 * H:4 * H]
                c = f_g * c + i_g * g_g
                h = o_g * jnp.tanh(c)
                h_steps.append(h)

            hn_ref[layer] = h                             # final states (B, H)
            cn_ref[layer] = c
            # Hidden sequence of this layer stays on-chip; it feeds the next layer /
            # the output head without ever touching HBM.
            inp = jnp.stack(h_steps, axis=1).reshape(B * T, H)

        # Output head on a lane-dense padded slab: sigmoid(h @ W_out^T + b).
        logits = jnp.dot(inp, w_out_ref[...],
                         preferred_element_type=f32) + b_out_ref[...]
        out_ref[...] = jax.nn.sigmoid(logits)             # (B*T, O_pad), unmasked store

    return kernel


def _fused_forward_call(x2d, lstm_params, w_out_pad, b_out_pad, B, T, H, O_pad):
    num_layers = len(lstm_params)
    inputs = [x2d]
    for lp in lstm_params:
        inputs += [lp["wih_t"], lp["whh_t"], lp["b"]]
    inputs += [w_out_pad, b_out_pad]

    kernel = _make_fused_forward_kernel(num_layers, B, T, H, O_pad)
    return pl.pallas_call(
        kernel,
        out_shape=(jax.ShapeDtypeStruct((B * T, O_pad), jnp.float32),
                   jax.ShapeDtypeStruct((num_layers, B, H), jnp.float32),
                   jax.ShapeDtypeStruct((num_layers, B, H), jnp.float32)),
        in_specs=[pl.BlockSpec(memory_space=pltpu.MemorySpace.VMEM)
                  for _ in inputs],
        out_specs=tuple(pl.BlockSpec(memory_space=pltpu.MemorySpace.VMEM)
                        for _ in range(3)),
    )(*inputs)


# ----------------------------------------------------------------------------
# Forward wrapper (mirror of BaseTeacherForce.forward, prev_context=None)
# ----------------------------------------------------------------------------
@jax.jit
def base_teacher_force_forward(sensory, instructions, prev_actions, params):
    """sensory (B,T,ds), instructions (B,T,di), prev_actions (B,T,da)
    -> (sigmoid(out_act_t) (B,T,10), (h_n (L,B,H), c_n (L,B,H)))."""
    # glue: feature concat (PyTorch dim=2); stays batch-first, no transposes.
    x = jnp.concatenate([sensory, instructions, prev_actions],
                        axis=2).astype(jnp.float32)                   # (B, T, D)
    B, T, D = x.shape
    H = params["lstm"][0]["whh_t"].shape[0]
    O = params["w_out_t"].shape[1]                                    # true head width
    O_pad = params["w_out_pad_t"].shape[1]                            # lane-dense width

    out_pad, h_n, c_n = _fused_forward_call(
        x.reshape(B * T, D), params["lstm"],
        params["w_out_pad_t"], params["b_out_pad"], B, T, H, O_pad)

    out = out_pad.reshape(B, T, O_pad)[:, :, :O]                      # drop lane padding
    return out, (h_n, c_n)


# ----------------------------------------------------------------------------
# Deterministic parameter construction (synthetic; shapes per module __init__)
# ----------------------------------------------------------------------------
def init_params(key, input_size, hidden_size, num_layers, out_size=10):
    params = {"lstm": []}
    scale = 1.0 / jnp.sqrt(hidden_size)
    for layer in range(num_layers):
        d_in = input_size if layer == 0 else hidden_size
        key, k1, k2, k3, k4 = jax.random.split(key, 5)
        w_ih = jax.random.uniform(k1, (4 * hidden_size, d_in), jnp.float32, -scale, scale)
        w_hh = jax.random.uniform(k2, (4 * hidden_size, hidden_size), jnp.float32, -scale, scale)
        b_ih = jax.random.uniform(k3, (4 * hidden_size,), jnp.float32, -scale, scale)
        b_hh = jax.random.uniform(k4, (4 * hidden_size,), jnp.float32, -scale, scale)
        params["lstm"].append({
            "wih_t": jnp.transpose(w_ih),                 # (d_in, 4H)
            "whh_t": jnp.transpose(w_hh),                 # (H, 4H)
            "b": (b_ih + b_hh).reshape(1, 4 * hidden_size),
        })
    key, k5, k6 = jax.random.split(key, 3)
    w_out = jax.random.uniform(k5, (out_size, hidden_size), jnp.float32, -scale, scale)
    b_out = jax.random.uniform(k6, (out_size,), jnp.float32, -scale, scale)
    params["w_out_t"] = jnp.transpose(w_out)              # (H, 10)
    params["b_out"] = b_out.reshape(1, out_size)

    # Lane-dense padded head (done ONCE here, not per forward call).
    o_pad = -(-out_size // 128) * 128
    params["w_out_pad_t"] = jnp.pad(params["w_out_t"], ((0, 0), (0, o_pad - out_size)))
    params["b_out_pad"] = jnp.pad(params["b_out"], ((0, 0), (0, o_pad - out_size)))
    return params


# ----------------------------------------------------------------------------
# Pure-JAX reference (for a loose numerical sanity check of the fused kernel)
# ----------------------------------------------------------------------------
def _reference_forward(sensory, instructions, prev_actions, params):
    x = jnp.concatenate([sensory, instructions, prev_actions], axis=2).astype(jnp.float32)
    B, T, _ = x.shape
    H = params["lstm"][0]["whh_t"].shape[0]
    inp = x
    h_last, c_last = [], []
    for lp in params["lstm"]:
        h = jnp.zeros((B, H), jnp.float32)
        c = jnp.zeros((B, H), jnp.float32)
        outs = []
        for t in range(T):
            gates = inp[:, t, :] @ lp["wih_t"] + h @ lp["whh_t"] + lp["b"]
            i_g = jax.nn.sigmoid(gates[:, :H])
            f_g = jax.nn.sigmoid(gates[:, H:2 * H])
            g_g = jnp.tanh(gates[:, 2 * H:3 * H])
            o_g = jax.nn.sigmoid(gates[:, 3 * H:])
            c = f_g * c + i_g * g_g
            h = o_g * jnp.tanh(c)
            outs.append(h)
        inp = jnp.stack(outs, axis=1)
        h_last.append(h)
        c_last.append(c)
    logits = inp @ params["w_out_t"] + params["b_out"]
    return jax.nn.sigmoid(logits), (jnp.stack(h_last), jnp.stack(c_last))


if __name__ == "__main__":
    # args: dsensory=8, dinst=16, daction=8 -> D=32; hidden_size=32; num_layers=2
    B, T = 2, 8
    dsensory, dinst, daction = 8, 16, 8
    hidden_size, num_layers = 32, 2

    key = jax.random.PRNGKey(0)
    key, ks, ki, ka = jax.random.split(key, 4)
    batch = {
        "sensory_observations": jax.random.normal(ks, (B, T, dsensory), jnp.float32),
        "instructions":         jax.random.normal(ki, (B, T, dinst), jnp.float32),
        "prev_actions":         jax.random.normal(ka, (B, T, daction), jnp.float32),
    }

    params = init_params(key, dsensory + dinst + daction, hidden_size, num_layers)

    out, (h_n, c_n) = base_teacher_force_forward(
        batch["sensory_observations"], batch["instructions"],
        batch["prev_actions"], params)
    jax.block_until_ready((out, h_n, c_n))

    assert out.shape == (B, T, 10)
    assert h_n.shape == (num_layers, B, hidden_size)
    assert c_n.shape == (num_layers, B, hidden_size)
    assert bool(jnp.all((out >= 0.0) & (out <= 1.0)))

    # Loose numerical check against a pure-JAX reference (matmul precision may differ).
    ref_out, (ref_h, ref_c) = _reference_forward(
        batch["sensory_observations"], batch["instructions"],
        batch["prev_actions"], params)
    assert float(jnp.max(jnp.abs(out - ref_out))) < 5e-2
    assert float(jnp.max(jnp.abs(h_n - ref_h))) < 5e-2
    assert float(jnp.max(jnp.abs(c_n - ref_c))) < 5e-2

    print("KERNEL_OK")
</pallas_src>

<mosaic_0001>
module attributes {stable_mosaic.version = 11 : i64} {
  func.func @kernel(%arg0: memref<16x32xf32, #tpu.memory_space<vmem>>, %arg1: memref<32x128xf32, #tpu.memory_space<vmem>>, %arg2: memref<32x128xf32, #tpu.memory_space<vmem>>, %arg3: memref<1x128xf32, #tpu.memory_space<vmem>>, %arg4: memref<32x128xf32, #tpu.memory_space<vmem>>, %arg5: memref<32x128xf32, #tpu.memory_space<vmem>>, %arg6: memref<1x128xf32, #tpu.memory_space<vmem>>, %arg7: memref<32x128xf32, #tpu.memory_space<vmem>>, %arg8: memref<1x128xf32, #tpu.memory_space<vmem>>, %arg9: memref<16x128xf32, #tpu.memory_space<vmem>>, %arg10: memref<2x2x32xf32, #tpu.memory_space<vmem>>, %arg11: memref<2x2x32xf32, #tpu.memory_space<vmem>>) attributes {dimension_semantics = [], scalar_prefetch = 0 : i64, scratch_operands = 0 : i64, tpu.core_type = #tpu.core_type<tc>} {
    %c0 = arith.constant 0 : index
    %c0_0 = arith.constant 0 : index
    %0 = vector.load %arg0[%c0, %c0_0] : memref<16x32xf32, #tpu.memory_space<vmem>>, vector<16x32xf32>
    %c0_1 = arith.constant 0 : index
    %c0_2 = arith.constant 0 : index
    %1 = vector.load %arg1[%c0_1, %c0_2] : memref<32x128xf32, #tpu.memory_space<vmem>>, vector<32x128xf32>
    %c0_3 = arith.constant 0 : index
    %c0_4 = arith.constant 0 : index
    %2 = vector.load %arg2[%c0_3, %c0_4] : memref<32x128xf32, #tpu.memory_space<vmem>>, vector<32x128xf32>
    %c0_5 = arith.constant 0 : index
    %c0_6 = arith.constant 0 : index
    %3 = vector.load %arg3[%c0_5, %c0_6] : memref<1x128xf32, #tpu.memory_space<vmem>>, vector<1x128xf32>
    %cst = arith.constant dense<0.000000e+00> : vector<16x128xf32>
    %4 = tpu.matmul %0, %1, %cst {dimension_numbers = #tpu.dot_dimension_numbers<[1], [0], [0], [1], [0, 0, 1, 1], [], []>} : vector<16x32xf32>, vector<32x128xf32>, vector<16x128xf32> -> vector<16x128xf32>
    %5 = vector.broadcast %3 : vector<1x128xf32> to vector<16x128xf32>
    %6 = arith.addf %4, %5 : vector<16x128xf32>
    %7 = vector.shape_cast %6 : vector<16x128xf32> to vector<2x8x128xf32>
    %cst_7 = arith.constant 0.000000e+00 : f32
    %8 = vector.broadcast %cst_7 : f32 to vector<2x32xf32>
    %cst_8 = arith.constant 0.000000e+00 : f32
    %9 = vector.broadcast %cst_8 : f32 to vector<2x32xf32>
    %10 = vector.extract_strided_slice %7 {offsets = [0, 0, 0], sizes = [2, 1, 128], strides = [1, 1, 1]} : vector<2x8x128xf32> to vector<2x1x128xf32>
    %11 = vector.shape_cast %10 : vector<2x1x128xf32> to vector<2x128xf32>
    %cst_9 = arith.constant dense<0.000000e+00> : vector<2x128xf32>
    %12 = tpu.matmul %8, %2, %cst_9 {dimension_numbers = #tpu.dot_dimension_numbers<[1], [0], [0], [1], [0, 0, 1, 1], [], []>} : vector<2x32xf32>, vector<32x128xf32>, vector<2x128xf32> -> vector<2x128xf32>
    %13 = arith.addf %11, %12 : vector<2x128xf32>
    %14 = arith.negf %13 : vector<2x128xf32>
    %15 = math.exp %14 : vector<2x128xf32>
    %cst_10 = arith.constant 1.000000e+00 : f32
    %16 = vector.broadcast %cst_10 : f32 to vector<2x128xf32>
    %17 = arith.addf %16, %15 : vector<2x128xf32>
    %18 = arith.divf %16, %17 : vector<2x128xf32>
    %19 = math.tanh %13 : vector<2x128xf32>
    %20 = vector.extract_strided_slice %18 {offsets = [0, 0], sizes = [2, 32], strides = [1, 1]} : vector<2x128xf32> to vector<2x32xf32>
    %21 = vector.extract_strided_slice %18 {offsets = [0, 32], sizes = [2, 32], strides = [1, 1]} : vector<2x128xf32> to vector<2x32xf32>
    %22 = vector.extract_strided_slice %19 {offsets = [0, 64], sizes = [2, 32], strides = [1, 1]} : vector<2x128xf32> to vector<2x32xf32>
    %23 = vector.extract_strided_slice %18 {offsets = [0, 96], sizes = [2, 32], strides = [1, 1]} : vector<2x128xf32> to vector<2x32xf32>
    %24 = arith.mulf %21, %9 : vector<2x32xf32>
    %25 = arith.mulf %20, %22 : vector<2x32xf32>
    %26 = arith.addf %24, %25 : vector<2x32xf32>
    %27 = math.tanh %26 : vector<2x32xf32>
    %28 = arith.mulf %23, %27 : vector<2x32xf32>
    %29 = vector.extract_strided_slice %7 {offsets = [0, 1, 0], sizes = [2, 1, 128], strides = [1, 1, 1]} : vector<2x8x128xf32> to vector<2x1x128xf32>
    %30 = vector.shape_cast %29 : vector<2x1x128xf32> to vector<2x128xf32>
    %cst_11 = arith.constant dense<0.000000e+00> : vector<2x128xf32>
    %31 = tpu.matmul %28, %2, %cst_11 {dimension_numbers = #tpu.dot_dimension_numbers<[1], [0], [0], [1], [0, 0, 1, 1], [], []>} : vector<2x32xf32>, vector<32x128xf32>, vector<2x128xf32> -> vector<2x128xf32>
    %32 = arith.addf %30, %31 : vector<2x128xf32>
    %33 = arith.negf %32 : vector<2x128xf32>
    %34 = math.exp %33 : vector<2x128xf32>
    %cst_12 = arith.constant 1.000000e+00 : f32
    %35 = vector.broadcast %cst_12 : f32 to vector<2x128xf32>
    %36 = arith.addf %35, %34 : vector<2x128xf32>
    %37 = arith.divf %35, %36 : vector<2x128xf32>
    %38 = math.tanh %32 : vector<2x128xf32>
    %39 = vector.extract_strided_slice %37 {offsets = [0, 0], sizes = [2, 32], strides = [1, 1]} : vector<2x128xf32> to vector<2x32xf32>
    %40 = vector.extract_strided_slice %37 {offsets = [0, 32], sizes = [2, 32], strides = [1, 1]} : vector<2x128xf32> to vector<2x32xf32>
    %41 = vector.extract_strided_slice %38 {offsets = [0, 64], sizes = [2, 32], strides = [1, 1]} : vector<2x128xf32> to vector<2x32xf32>
    %42 = vector.extract_strided_slice %37 {offsets = [0, 96], sizes = [2, 32], strides = [1, 1]} : vector<2x128xf32> to vector<2x32xf32>
    %43 = arith.mulf %40, %26 : vector<2x32xf32>
    %44 = arith.mulf %39, %41 : vector<2x32xf32>
    %45 = arith.addf %43, %44 : vector<2x32xf32>
    %46 = math.tanh %45 : vector<2x32xf32>
    %47 = arith.mulf %42, %46 : vector<2x32xf32>
    %48 = vector.extract_strided_slice %7 {offsets = [0, 2, 0], sizes = [2, 1, 128], strides = [1, 1, 1]} : vector<2x8x128xf32> to vector<2x1x128xf32>
    %49 = vector.shape_cast %48 : vector<2x1x128xf32> to vector<2x128xf32>
    %cst_13 = arith.constant dense<0.000000e+00> : vector<2x128xf32>
    %50 = tpu.matmul %47, %2, %cst_13 {dimension_numbers = #tpu.dot_dimension_numbers<[1], [0], [0], [1], [0, 0, 1, 1], [], []>} : vector<2x32xf32>, vector<32x128xf32>, vector<2x128xf32> -> vector<2x128xf32>
    %51 = arith.addf %49, %50 : vector<2x128xf32>
    %52 = arith.negf %51 : vector<2x128xf32>
    %53 = math.exp %52 : vector<2x128xf32>
    %cst_14 = arith.constant 1.000000e+00 : f32
    %54 = vector.broadcast %cst_14 : f32 to vector<2x128xf32>
    %55 = arith.addf %54, %53 : vector<2x128xf32>
    %56 = arith.divf %54, %55 : vector<2x128xf32>
    %57 = math.tanh %51 : vector<2x128xf32>
    %58 = vector.extract_strided_slice %56 {offsets = [0, 0], sizes = [2, 32], strides = [1, 1]} : vector<2x128xf32> to vector<2x32xf32>
    %59 = vector.extract_strided_slice %56 {offsets = [0, 32], sizes = [2, 32], strides = [1, 1]} : vector<2x128xf32> to vector<2x32xf32>
    %60 = vector.extract_strided_slice %57 {offsets = [0, 64], sizes = [2, 32], strides = [1, 1]} : vector<2x128xf32> to vector<2x32xf32>
    %61 = vector.extract_strided_slice %56 {offsets = [0, 96], sizes = [2, 32], strides = [1, 1]} : vector<2x128xf32> to vector<2x32xf32>
    %62 = arith.mulf %59, %45 : vector<2x32xf32>
    %63 = arith.mulf %58, %60 : vector<2x32xf32>
    %64 = arith.addf %62, %63 : vector<2x32xf32>
    %65 = math.tanh %64 : vector<2x32xf32>
    %66 = arith.mulf %61, %65 : vector<2x32xf32>
    %67 = vector.extract_strided_slice %7 {offsets = [0, 3, 0], sizes = [2, 1, 128], strides = [1, 1, 1]} : vector<2x8x128xf32> to vector<2x1x128xf32>
    %68 = vector.shape_cast %67 : vector<2x1x128xf32> to vector<2x128xf32>
    %cst_15 = arith.constant dense<0.000000e+00> : vector<2x128xf32>
    %69 = tpu.matmul %66, %2, %cst_15 {dimension_numbers = #tpu.dot_dimension_numbers<[1], [0], [0], [1], [0, 0, 1, 1], [], []>} : vector<2x32xf32>, vector<32x128xf32>, vector<2x128xf32> -> vector<2x128xf32>
    %70 = arith.addf %68, %69 : vector<2x128xf32>
    %71 = arith.negf %70 : vector<2x128xf32>
    %72 = math.exp %71 : vector<2x128xf32>
    %cst_16 = arith.constant 1.000000e+00 : f32
    %73 = vector.broadcast %cst_16 : f32 to vector<2x128xf32>
    %74 = arith.addf %73, %72 : vector<2x128xf32>
    %75 = arith.divf %73, %74 : vector<2x128xf32>
    %76 = math.tanh %70 : vector<2x128xf32>
    %77 = vector.extract_strided_slice %75 {offsets = [0, 0], sizes = [2, 32], strides = [1, 1]} : vector<2x128xf32> to vector<2x32xf32>
    %78 = vector.extract_strided_slice %75 {offsets = [0, 32], sizes = [2, 32], strides = [1, 1]} : vector<2x128xf32> to vector<2x32xf32>
    %79 = vector.extract_strided_slice %76 {offsets = [0, 64], sizes = [2, 32], strides = [1, 1]} : vector<2x128xf32> to vector<2x32xf32>
    %80 = vector.extract_strided_slice %75 {offsets = [0, 96], sizes = [2, 32], strides = [1, 1]} : vector<2x128xf32> to vector<2x32xf32>
    %81 = arith.mulf %78, %64 : vector<2x32xf32>
    %82 = arith.mulf %77, %79 : vector<2x32xf32>
    %83 = arith.addf %81, %82 : vector<2x32xf32>
    %84 = math.tanh %83 : vector<2x32xf32>
    %85 = arith.mulf %80, %84 : vector<2x32xf32>
    %86 = vector.extract_strided_slice %7 {offsets = [0, 4, 0], sizes = [2, 1, 128], strides = [1, 1, 1]} : vector<2x8x128xf32> to vector<2x1x128xf32>
    %87 = vector.shape_cast %86 : vector<2x1x128xf32> to vector<2x128xf32>
    %cst_17 = arith.constant dense<0.000000e+00> : vector<2x128xf32>
    %88 = tpu.matmul %85, %2, %cst_17 {dimension_numbers = #tpu.dot_dimension_numbers<[1], [0], [0], [1], [0, 0, 1, 1], [], []>} : vector<2x32xf32>, vector<32x128xf32>, vector<2x128xf32> -> vector<2x128xf32>
    %89 = arith.addf %87, %88 : vector<2x128xf32>
    %90 = arith.negf %89 : vector<2x128xf32>
    %91 = math.exp %90 : vector<2x128xf32>
    %cst_18 = arith.constant 1.000000e+00 : f32
    %92 = vector.broadcast %cst_18 : f32 to vector<2x128xf32>
    %93 = arith.addf %92, %91 : vector<2x128xf32>
    %94 = arith.divf %92, %93 : vector<2x128xf32>
    %95 = math.tanh %89 : vector<2x128xf32>
    %96 = vector.extract_strided_slice %94 {offsets = [0, 0], sizes = [2, 32], strides = [1, 1]} : vector<2x128xf32> to vector<2x32xf32>
    %97 = vector.extract_strided_slice %94 {offsets = [0, 32], sizes = [2, 32], strides = [1, 1]} : vector<2x128xf32> to vector<2x32xf32>
    %98 = vector.extract_strided_slice %95 {offsets = [0, 64], sizes = [2, 32], strides = [1, 1]} : vector<2x128xf32> to vector<2x32xf32>
    %99 = vector.extract_strided_slice %94 {offsets = [0, 96], sizes = [2, 32], strides = [1, 1]} : vector<2x128xf32> to vector<2x32xf32>
    %100 = arith.mulf %97, %83 : vector<2x32xf32>
    %101 = arith.mulf %96, %98 : vector<2x32xf32>
    %102 = arith.addf %100, %101 : vector<2x32xf32>
    %103 = math.tanh %102 : vector<2x32xf32>
    %104 = arith.mulf %99, %103 : vector<2x32xf32>
    %105 = vector.extract_strided_slice %7 {offsets = [0, 5, 0], sizes = [2, 1, 128], strides = [1, 1, 1]} : vector<2x8x128xf32> to vector<2x1x128xf32>
    %106 = vector.shape_cast %105 : vector<2x1x128xf32> to vector<2x128xf32>
    %cst_19 = arith.constant dense<0.000000e+00> : vector<2x128xf32>
    %107 = tpu.matmul %104, %2, %cst_19 {dimension_numbers = #tpu.dot_dimension_numbers<[1], [0], [0], [1], [0, 0, 1, 1], [], []>} : vector<2x32xf32>, vector<32x128xf32>, vector<2x128xf32> -> vector<2x128xf32>
    %108 = arith.addf %106, %107 : vector<2x128xf32>
    %109 = arith.negf %108 : vector<2x128xf32>
    %110 = math.exp %109 : vector<2x128xf32>
    %cst_20 = arith.constant 1.000000e+00 : f32
    %111 = vector.broadcast %cst_20 : f32 to vector<2x128xf32>
    %112 = arith.addf %111, %110 : vector<2x128xf32>
    %113 = arith.divf %111, %112 : vector<2x128xf32>
    %114 = math.tanh %108 : vector<2x128xf32>
    %115 = vector.extract_strided_slice %113 {offsets = [0, 0], sizes = [2, 32], strides = [1, 1]} : vector<2x128xf32> to vector<2x32xf32>
    %116 = vector.extract_strided_slice %113 {offsets = [0, 32], sizes = [2, 32], strides = [1, 1]} : vector<2x128xf32> to vector<2x32xf32>
    %117 = vector.extract_strided_slice %114 {offsets = [0, 64], sizes = [2, 32], strides = [1, 1]} : vector<2x128xf32> to vector<2x32xf32>
    %118 = vector.extract_strided_slice %113 {offsets = [0, 96], sizes = [2, 32], strides = [1, 1]} : vector<2x128xf32> to vector<2x32xf32>
    %119 = arith.mulf %116, %102 : vector<2x32xf32>
    %120 = arith.mulf %115, %117 : vector<2x32xf32>
    %121 = arith.addf %119, %120 : vector<2x32xf32>
    %122 = math.tanh %121 : vector<2x32xf32>
    %123 = arith.mulf %118, %122 : vector<2x32xf32>
    %124 = vector.extract_strided_slice %7 {offsets = [0, 6, 0], sizes = [2, 1, 128], strides = [1, 1, 1]} : vector<2x8x128xf32> to vector<2x1x128xf32>
    %125 = vector.shape_cast %124 : vector<2x1x128xf32> to vector<2x128xf32>
    %cst_21 = arith.constant dense<0.000000e+00> : vector<2x128xf32>
    %126 = tpu.matmul %123, %2, %cst_21 {dimension_numbers = #tpu.dot_dimension_numbers<[1], [0], [0], [1], [0, 0, 1, 1], [], []>} : vector<2x32xf32>, vector<32x128xf32>, vector<2x128xf32> -> vector<2x128xf32>
    %127 = arith.addf %125, %126 : vector<2x128xf32>
    %128 = arith.negf %127 : vector<2x128xf32>
    %129 = math.exp %128 : vector<2x128xf32>
    %cst_22 = arith.constant 1.000000e+00 : f32
    %130 = vector.broadcast %cst_22 : f32 to vector<2x128xf32>
    %131 = arith.addf %130, %129 : vector<2x128xf32>
    %132 = arith.divf %130, %131 : vector<2x128xf32>
    %133 = math.tanh %127 : vector<2x128xf32>
    %134 = vector.extract_strided_slice %132 {offsets = [0, 0], sizes = [2, 32], strides = [1, 1]} : vector<2x128xf32> to vector<2x32xf32>
    %135 = vector.extract_strided_slice %132 {offsets = [0, 32], sizes = [2, 32], strides = [1, 1]} : vector<2x128xf32> to vector<2x32xf32>
    %136 = vector.extract_strided_slice %133 {offsets = [0, 64], sizes = [2, 32], strides = [1, 1]} : vector<2x128xf32> to vector<2x32xf32>
    %137 = vector.extract_strided_slice %132 {offsets = [0, 96], sizes = [2, 32], strides = [1, 1]} : vector<2x128xf32> to vector<2x32xf32>
    %138 = arith.mulf %135, %121 : vector<2x32xf32>
    %139 = arith.mulf %134, %136 : vector<2x32xf32>
    %140 = arith.addf %138, %139 : vector<2x32xf32>
    %141 = math.tanh %140 : vector<2x32xf32>
    %142 = arith.mulf %137, %141 : vector<2x32xf32>
    %143 = vector.extract_strided_slice %7 {offsets = [0, 7, 0], sizes = [2, 1, 128], strides = [1, 1, 1]} : vector<2x8x128xf32> to vector<2x1x128xf32>
    %144 = vector.shape_cast %143 : vector<2x1x128xf32> to vector<2x128xf32>
    %cst_23 = arith.constant dense<0.000000e+00> : vector<2x128xf32>
    %145 = tpu.matmul %142, %2, %cst_23 {dimension_numbers = #tpu.dot_dimension_numbers<[1], [0], [0], [1], [0, 0, 1, 1], [], []>} : vector<2x32xf32>, vector<32x128xf32>, vector<2x128xf32> -> vector<2x128xf32>
    %146 = arith.addf %144, %145 : vector<2x128xf32>
    %147 = arith.negf %146 : vector<2x128xf32>
    %148 = math.exp %147 : vector<2x128xf32>
    %cst_24 = arith.constant 1.000000e+00 : f32
    %149 = vector.broadcast %cst_24 : f32 to vector<2x128xf32>
    %150 = arith.addf %149, %148 : vector<2x128xf32>
    %151 = arith.divf %149, %150 : vector<2x128xf32>
    %152 = math.tanh %146 : vector<2x128xf32>
    %153 = vector.extract_strided_slice %151 {offsets = [0, 0], sizes = [2, 32], strides = [1, 1]} : vector<2x128xf32> to vector<2x32xf32>
    %154 = vector.extract_strided_slice %151 {offsets = [0, 32], sizes = [2, 32], strides = [1, 1]} : vector<2x128xf32> to vector<2x32xf32>
    %155 = vector.extract_strided_slice %152 {offsets = [0, 64], sizes = [2, 32], strides = [1, 1]} : vector<2x128xf32> to vector<2x32xf32>
    %156 = vector.extract_strided_slice %151 {offsets = [0, 96], sizes = [2, 32], strides = [1, 1]} : vector<2x128xf32> to vector<2x32xf32>
    %157 = arith.mulf %154, %140 : vector<2x32xf32>
    %158 = arith.mulf %153, %155 : vector<2x32xf32>
    %159 = arith.addf %157, %158 : vector<2x32xf32>
    %160 = math.tanh %159 : vector<2x32xf32>
    %161 = arith.mulf %156, %160 : vector<2x32xf32>
    %c0_25 = arith.constant 0 : index
    %c0_26 = arith.constant 0 : index
    %c0_27 = arith.constant 0 : index
    %162 = vector.load %arg10[%c0_25, %c0_26, %c0_27] : memref<2x2x32xf32, #tpu.memory_space<vmem>>, vector<1x2x32xf32>
    %163 = vector.shape_cast %162 : vector<1x2x32xf32> to vector<2x32xf32>
    %164 = vector.shape_cast %161 : vector<2x32xf32> to vector<1x2x32xf32>
    tpu.vector_store %arg10[%c0_25, %c0_26, %c0_27], %164 {strides = array<i32>} : memref<2x2x32xf32, #tpu.memory_space<vmem>>, vector<1x2x32xf32>,
    %c0_28 = arith.constant 0 : index
    %c0_29 = arith.constant 0 : index
    %c0_30 = arith.constant 0 : index
    %165 = vector.load %arg11[%c0_28, %c0_29, %c0_30] : memref<2x2x32xf32, #tpu.memory_space<vmem>>, vector<1x2x32xf32>
    %166 = vector.shape_cast %165 : vector<1x2x32xf32> to vector<2x32xf32>
    %167 = vector.shape_cast %159 : vector<2x32xf32> to vector<1x2x32xf32>
    tpu.vector_store %arg11[%c0_28, %c0_29, %c0_30], %167 {strides = array<i32>} : memref<2x2x32xf32, #tpu.memory_space<vmem>>, vector<1x2x32xf32>,
    %168 = vector.shape_cast %28 : vector<2x32xf32> to vector<2x1x32xf32>
    %169 = vector.shape_cast %47 : vector<2x32xf32> to vector<2x1x32xf32>
    %170 = vector.shape_cast %66 : vector<2x32xf32> to vector<2x1x32xf32>
    %171 = vector.shape_cast %85 : vector<2x32xf32> to vector<2x1x32xf32>
    %172 = vector.shape_cast %104 : vector<2x32xf32> to vector<2x1x32xf32>
    %173 = vector.shape_cast %123 : vector<2x32xf32> to vector<2x1x32xf32>
    %174 = vector.shape_cast %142 : vector<2x32xf32> to vector<2x1x32xf32>
    %175 = vector.shape_cast %161 : vector<2x32xf32> to vector<2x1x32xf32>
    %176 = tpu.concatenate %168, %169, %170, %171, %172, %173, %174, %175 in 1 : vector<2x1x32xf32>, vector<2x1x32xf32>, vector<2x1x32xf32>, vector<2x1x32xf32>, vector<2x1x32xf32>, vector<2x1x32xf32>, vector<2x1x32xf32>, vector<2x1x32xf32> -> vector<2x8x32xf32>
    %177 = vector.shape_cast %176 : vector<2x8x32xf32> to vector<16x32xf32>
    %c0_31 = arith.constant 0 : index
    %c0_32 = arith.constant 0 : index
    %178 = vector.load %arg4[%c0_31, %c0_32] : memref<32x128xf32, #tpu.memory_space<vmem>>, vector<32x128xf32>
    %c0_33 = arith.constant 0 : index
    %c0_34 = arith.constant 0 : index
    %179 = vector.load %arg5[%c0_33, %c0_34] : memref<32x128xf32, #tpu.memory_space<vmem>>, vector<32x128xf32>
    %c0_35 = arith.constant 0 : index
    %c0_36 = arith.constant 0 : index
    %180 = vector.load %arg6[%c0_35, %c0_36] : memref<1x128xf32, #tpu.memory_space<vmem>>, vector<1x128xf32>
    %cst_37 = arith.constant dense<0.000000e+00> : vector<16x128xf32>
    %181 = tpu.matmul %177, %178, %cst_37 {dimension_numbers = #tpu.dot_dimension_numbers<[1], [0], [0], [1], [0, 0, 1, 1], [], []>} : vector<16x32xf32>, vector<32x128xf32>, vector<16x128xf32> -> vector<16x128xf32>
    %182 = vector.broadcast %180 : vector<1x128xf32> to vector<16x128xf32>
    %183 = arith.addf %181, %182 : vector<16x128xf32>
    %184 = vector.shape_cast %183 : vector<16x128xf32> to vector<2x8x128xf32>
    %cst_38 = arith.constant 0.000000e+00 : f32
    %185 = vector.broadcast %cst_38 : f32 to vector<2x32xf32>
    %cst_39 = arith.constant 0.000000e+00 : f32
    %186 = vector.broadcast %cst_39 : f32 to vector<2x32xf32>
    %187 = vector.extract_strided_slice %184 {offsets = [0, 0, 0], sizes = [2, 1, 128], strides = [1, 1, 1]} : vector<2x8x128xf32> to vector<2x1x128xf32>
    %188 = vector.shape_cast %187 : vector<2x1x128xf32> to vector<2x128xf32>
    %cst_40 = arith.constant dense<0.000000e+00> : vector<2x128xf32>
    %189 = tpu.matmul %185, %179, %cst_40 {dimension_numbers = #tpu.dot_dimension_numbers<[1], [0], [0], [1], [0, 0, 1, 1], [], []>} : vector<2x32xf32>, vector<32x128xf32>, vector<2x128xf32> -> vector<2x128xf32>
    %190 = arith.addf %188, %189 : vector<2x128xf32>
    %191 = arith.negf %190 : vector<2x128xf32>
    %192 = math.exp %191 : vector<2x128xf32>
    %cst_41 = arith.constant 1.000000e+00 : f32
    %193 = vector.broadcast %cst_41 : f32 to vector<2x128xf32>
    %194 = arith.addf %193, %192 : vector<2x128xf32>
    %195 = arith.divf %193, %194 : vector<2x128xf32>
    %196 = math.tanh %190 : vector<2x128xf32>
    %197 = vector.extract_strided_slice %195 {offsets = [0, 0], sizes = [2, 32], strides = [1, 1]} : vector<2x128xf32> to vector<2x32xf32>
    %198 = vector.extract_strided_slice %195 {offsets = [0, 32], sizes = [2, 32], strides = [1, 1]} : vector<2x128xf32> to vector<2x32xf32>
    %199 = vector.extract_strided_slice %196 {offsets = [0, 64], sizes = [2, 32], strides = [1, 1]} : vector<2x128xf32> to vector<2x32xf32>
    %200 = vector.extract_strided_slice %195 {offsets = [0, 96], sizes = [2, 32], strides = [1, 1]} : vector<2x128xf32> to vector<2x32xf32>
    %201 = arith.mulf %198, %186 : vector<2x32xf32>
    %202 = arith.mulf %197, %199 : vector<2x32xf32>
    %203 = arith.addf %201, %202 : vector<2x32xf32>
    %204 = math.tanh %203 : vector<2x32xf32>
    %205 = arith.mulf %200, %204 : vector<2x32xf32>
    %206 = vector.extract_strided_slice %184 {offsets = [0, 1, 0], sizes = [2, 1, 128], strides = [1, 1, 1]} : vector<2x8x128xf32> to vector<2x1x128xf32>
    %207 = vector.shape_cast %206 : vector<2x1x128xf32> to vector<2x128xf32>
    %cst_42 = arith.constant dense<0.000000e+00> : vector<2x128xf32>
    %208 = tpu.matmul %205, %179, %cst_42 {dimension_numbers = #tpu.dot_dimension_numbers<[1], [0], [0], [1], [0, 0, 1, 1], [], []>} : vector<2x32xf32>, vector<32x128xf32>, vector<2x128xf32> -> vector<2x128xf32>
    %209 = arith.addf %207, %208 : vector<2x128xf32>
    %210 = arith.negf %209 : vector<2x128xf32>
    %211 = math.exp %210 : vector<2x128xf32>
    %cst_43 = arith.constant 1.000000e+00 : f32
    %212 = vector.broadcast %cst_43 : f32 to vector<2x128xf32>
    %213 = arith.addf %212, %211 : vector<2x128xf32>
    %214 = arith.divf %212, %213 : vector<2x128xf32>
    %215 = math.tanh %209 : vector<2x128xf32>
    %216 = vector.extract_strided_slice %214 {offsets = [0, 0], sizes = [2, 32], strides = [1, 1]} : vector<2x128xf32> to vector<2x32xf32>
    %217 = vector.extract_strided_slice %214 {offsets = [0, 32], sizes = [2, 32], strides = [1, 1]} : vector<2x128xf32> to vector<2x32xf32>
    %218 = vector.extract_strided_slice %215 {offsets = [0, 64], sizes = [2, 32], strides = [1, 1]} : vector<2x128xf32> to vector<2x32xf32>
    %219 = vector.extract_strided_slice %214 {offsets = [0, 96], sizes = [2, 32], strides = [1, 1]} : vector<2x128xf32> to vector<2x32xf32>
    %220 = arith.mulf %217, %203 : vector<2x32xf32>
    %221 = arith.mulf %216, %218 : vector<2x32xf32>
    %222 = arith.addf %220, %221 : vector<2x32xf32>
    %223 = math.tanh %222 : vector<2x32xf32>
    %224 = arith.mulf %219, %223 : vector<2x32xf32>
    %225 = vector.extract_strided_slice %184 {offsets = [0, 2, 0], sizes = [2, 1, 128], strides = [1, 1, 1]} : vector<2x8x128xf32> to vector<2x1x128xf32>
    %226 = vector.shape_cast %225 : vector<2x1x128xf32> to vector<2x128xf32>
    %cst_44 = arith.constant dense<0.000000e+00> : vector<2x128xf32>
    %227 = tpu.matmul %224, %179, %cst_44 {dimension_numbers = #tpu.dot_dimension_numbers<[1], [0], [0], [1], [0, 0, 1, 1], [], []>} : vector<2x32xf32>, vector<32x128xf32>, vector<2x128xf32> -> vector<2x128xf32>
    %228 = arith.addf %226, %227 : vector<2x128xf32>
    %229 = arith.negf %228 : vector<2x128xf32>
    %230 = math.exp %229 : vector<2x128xf32>
    %cst_45 = arith.constant 1.000000e+00 : f32
    %231 = vector.broadcast %cst_45 : f32 to vector<2x128xf32>
    %232 = arith.addf %231, %230 : vector<2x128xf32>
    %233 = arith.divf %231, %232 : vector<2x128xf32>
    %234 = math.tanh %228 : vector<2x128xf32>
    %235 = vector.extract_strided_slice %233 {offsets = [0, 0], sizes = [2, 32], strides = [1, 1]} : vector<2x128xf32> to vector<2x32xf32>
    %236 = vector.extract_strided_slice %233 {offsets = [0, 32], sizes = [2, 32], strides = [1, 1]} : vector<2x128xf32> to vector<2x32xf32>
    %237 = vector.extract_strided_slice %234 {offsets = [0, 64], sizes = [2, 32], strides = [1, 1]} : vector<2x128xf32> to vector<2x32xf32>
    %238 = vector.extract_strided_slice %233 {offsets = [0, 96], sizes = [2, 32], strides = [1, 1]} : vector<2x128xf32> to vector<2x32xf32>
    %239 = arith.mulf %236, %222 : vector<2x32xf32>
    %240 = arith.mulf %235, %237 : vector<2x32xf32>
    %241 = arith.addf %239, %240 : vector<2x32xf32>
    %242 = math.tanh %241 : vector<2x32xf32>
    %243 = arith.mulf %238, %242 : vector<2x32xf32>
    %244 = vector.extract_strided_slice %184 {offsets = [0, 3, 0], sizes = [2, 1, 128], strides = [1, 1, 1]} : vector<2x8x128xf32> to vector<2x1x128xf32>
    %245 = vector.shape_cast %244 : vector<2x1x128xf32> to vector<2x128xf32>
    %cst_46 = arith.constant dense<0.000000e+00> : vector<2x128xf32>
    %246 = tpu.matmul %243, %179, %cst_46 {dimension_numbers = #tpu.dot_dimension_numbers<[1], [0], [0], [1], [0, 0, 1, 1], [], []>} : vector<2x32xf32>, vector<32x128xf32>, vector<2x128xf32> -> vector<2x128xf32>
    %247 = arith.addf %245, %246 : vector<2x128xf32>
    %248 = arith.negf %247 : vector<2x128xf32>
    %249 = math.exp %248 : vector<2x128xf32>
    %cst_47 = arith.constant 1.000000e+00 : f32
    %250 = vector.broadcast %cst_47 : f32 to vector<2x128xf32>
    %251 = arith.addf %250, %249 : vector<2x128xf32>
    %252 = arith.divf %250, %251 : vector<2x128xf32>
    %253 = math.tanh %247 : vector<2x128xf32>
    %254 = vector.extract_strided_slice %252 {offsets = [0, 0], sizes = [2, 32], strides = [1, 1]} : vector<2x128xf32> to vector<2x32xf32>
    %255 = vector.extract_strided_slice %252 {offsets = [0, 32], sizes = [2, 32], strides = [1, 1]} : vector<2x128xf32> to vector<2x32xf32>
    %256 = vector.extract_strided_slice %253 {offsets = [0, 64], sizes = [2, 32], strides = [1, 1]} : vector<2x128xf32> to vector<2x32xf32>
    %257 = vector.extract_strided_slice %252 {offsets = [0, 96], sizes = [2, 32], strides = [1, 1]} : vector<2x128xf32> to vector<2x32xf32>
    %258 = arith.mulf %255, %241 : vector<2x32xf32>
    %259 = arith.mulf %254, %256 : vector<2x32xf32>
    %260 = arith.addf %258, %259 : vector<2x32xf32>
    %261 = math.tanh %260 : vector<2x32xf32>
    %262 = arith.mulf %257, %261 : vector<2x32xf32>
    %263 = vector.extract_strided_slice %184 {offsets = [0, 4, 0], sizes = [2, 1, 128], strides = [1, 1, 1]} : vector<2x8x128xf32> to vector<2x1x128xf32>
    %264 = vector.shape_cast %263 : vector<2x1x128xf32> to vector<2x128xf32>
    %cst_48 = arith.constant dense<0.000000e+00> : vector<2x128xf32>
    %265 = tpu.matmul %262, %179, %cst_48 {dimension_numbers = #tpu.dot_dimension_numbers<[1], [0], [0], [1], [0, 0, 1, 1], [], []>} : vector<2x32xf32>, vector<32x128xf32>, vector<2x128xf32> -> vector<2x128xf32>
    %266 = arith.addf %264, %265 : vector<2x128xf32>
    %267 = arith.negf %266 : vector<2x128xf32>
    %268 = math.exp %267 : vector<2x128xf32>
    %cst_49 = arith.constant 1.000000e+00 : f32
    %269 = vector.broadcast %cst_49 : f32 to vector<2x128xf32>
    %270 = arith.addf %269, %268 : vector<2x128xf32>
    %271 = arith.divf %269, %270 : vector<2x128xf32>
    %272 = math.tanh %266 : vector<2x128xf32>
    %273 = vector.extract_strided_slice %271 {offsets = [0, 0], sizes = [2, 32], strides = [1, 1]} : vector<2x128xf32> to vector<2x32xf32>
    %274 = vector.extract_strided_slice %271 {offsets = [0, 32], sizes = [2, 32], strides = [1, 1]} : vector<2x128xf32> to vector<2x32xf32>
    %275 = vector.extract_strided_slice %272 {offsets = [0, 64], sizes = [2, 32], strides = [1, 1]} : vector<2x128xf32> to vector<2x32xf32>
    %276 = vector.extract_strided_slice %271 {offsets = [0, 96], sizes = [2, 32], strides = [1, 1]} : vector<2x128xf32> to vector<2x32xf32>
    %277 = arith.mulf %274, %260 : vector<2x32xf32>
    %278 = arith.mulf %273, %275 : vector<2x32xf32>
    %279 = arith.addf %277, %278 : vector<2x32xf32>
    %280 = math.tanh %279 : vector<2x32xf32>
    %281 = arith.mulf %276, %280 : vector<2x32xf32>
    %282 = vector.extract_strided_slice %184 {offsets = [0, 5, 0], sizes = [2, 1, 128], strides = [1, 1, 1]} : vector<2x8x128xf32> to vector<2x1x128xf32>
    %283 = vector.shape_cast %282 : vector<2x1x128xf32> to vector<2x128xf32>
    %cst_50 = arith.constant dense<0.000000e+00> : vector<2x128xf32>
    %284 = tpu.matmul %281, %179, %cst_50 {dimension_numbers = #tpu.dot_dimension_numbers<[1], [0], [0], [1], [0, 0, 1, 1], [], []>} : vector<2x32xf32>, vector<32x128xf32>, vector<2x128xf32> -> vector<2x128xf32>
    %285 = arith.addf %283, %284 : vector<2x128xf32>
    %286 = arith.negf %285 : vector<2x128xf32>
    %287 = math.exp %286 : vector<2x128xf32>
    %cst_51 = arith.constant 1.000000e+00 : f32
    %288 = vector.broadcast %cst_51 : f32 to vector<2x128xf32>
    %289 = arith.addf %288, %287 : vector<2x128xf32>
    %290 = arith.divf %288, %289 : vector<2x128xf32>
    %291 = math.tanh %285 : vector<2x128xf32>
    %292 = vector.extract_strided_slice %290 {offsets = [0, 0], sizes = [2, 32], strides = [1, 1]} : vector<2x128xf32> to vector<2x32xf32>
    %293 = vector.extract_strided_slice %290 {offsets = [0, 32], sizes = [2, 32], strides = [1, 1]} : vector<2x128xf32> to vector<2x32xf32>
    %294 = vector.extract_strided_slice %291 {offsets = [0, 64], sizes = [2, 32], strides = [1, 1]} : vector<2x128xf32> to vector<2x32xf32>
    %295 = vector.extract_strided_slice %290 {offsets = [0, 96], sizes = [2, 32], strides = [1, 1]} : vector<2x128xf32> to vector<2x32xf32>
    %296 = arith.mulf %293, %279 : vector<2x32xf32>
    %297 = arith.mulf %292, %294 : vector<2x32xf32>
    %298 = arith.addf %296, %297 : vector<2x32xf32>
    %299 = math.tanh %298 : vector<2x32xf32>
    %300 = arith.mulf %295, %299 : vector<2x32xf32>
    %301 = vector.extract_strided_slice %184 {offsets = [0, 6, 0], sizes = [2, 1, 128], strides = [1, 1, 1]} : vector<2x8x128xf32> to vector<2x1x128xf32>
    %302 = vector.shape_cast %301 : vector<2x1x128xf32> to vector<2x128xf32>
    %cst_52 = arith.constant dense<0.000000e+00> : vector<2x128xf32>
    %303 = tpu.matmul %300, %179, %cst_52 {dimension_numbers = #tpu.dot_dimension_numbers<[1], [0], [0], [1], [0, 0, 1, 1], [], []>} : vector<2x32xf32>, vector<32x128xf32>, vector<2x128xf32> -> vector<2x128xf32>
    %304 = arith.addf %302, %303 : vector<2x128xf32>
    %305 = arith.negf %304 : vector<2x128xf32>
    %306 = math.exp %305 : vector<2x128xf32>
    %cst_53 = arith.constant 1.000000e+00 : f32
    %307 = vector.broadcast %cst_53 : f32 to vector<2x128xf32>
    %308 = arith.addf %307, %306 : vector<2x128xf32>
    %309 = arith.divf %307, %308 : vector<2x128xf32>
    %310 = math.tanh %304 : vector<2x128xf32>
    %311 = vector.extract_strided_slice %309 {offsets = [0, 0], sizes = [2, 32], strides = [1, 1]} : vector<2x128xf32> to vector<2x32xf32>
    %312 = vector.extract_strided_slice %309 {offsets = [0, 32], sizes = [2, 32], strides = [1, 1]} : vector<2x128xf32> to vector<2x32xf32>
    %313 = vector.extract_strided_slice %310 {offsets = [0, 64], sizes = [2, 32], strides = [1, 1]} : vector<2x128xf32> to vector<2x32xf32>
    %314 = vector.extract_strided_slice %309 {offsets = [0, 96], sizes = [2, 32], strides = [1, 1]} : vector<2x128xf32> to vector<2x32xf32>
    %315 = arith.mulf %312, %298 : vector<2x32xf32>
    %316 = arith.mulf %311, %313 : vector<2x32xf32>
    %317 = arith.addf %315, %316 : vector<2x32xf32>
    %318 = math.tanh %317 : vector<2x32xf32>
    %319 = arith.mulf %314, %318 : vector<2x32xf32>
    %320 = vector.extract_strided_slice %184 {offsets = [0, 7, 0], sizes = [2, 1, 128], strides = [1, 1, 1]} : vector<2x8x128xf32> to vector<2x1x128xf32>
    %321 = vector.shape_cast %320 : vector<2x1x128xf32> to vector<2x128xf32>
    %cst_54 = arith.constant dense<0.000000e+00> : vector<2x128xf32>
    %322 = tpu.matmul %319, %179, %cst_54 {dimension_numbers = #tpu.dot_dimension_numbers<[1], [0], [0], [1], [0, 0, 1, 1], [], []>} : vector<2x32xf32>, vector<32x128xf32>, vector<2x128xf32> -> vector<2x128xf32>
    %323 = arith.addf %321, %322 : vector<2x128xf32>
    %324 = arith.negf %323 : vector<2x128xf32>
    %325 = math.exp %324 : vector<2x128xf32>
    %cst_55 = arith.constant 1.000000e+00 : f32
    %326 = vector.broadcast %cst_55 : f32 to vector<2x128xf32>
    %327 = arith.addf %326, %325 : vector<2x128xf32>
    %328 = arith.divf %326, %327 : vector<2x128xf32>
    %329 = math.tanh %323 : vector<2x128xf32>
    %330 = vector.extract_strided_slice %328 {offsets = [0, 0], sizes = [2, 32], strides = [1, 1]} : vector<2x128xf32> to vector<2x32xf32>
    %331 = vector.extract_strided_slice %328 {offsets = [0, 32], sizes = [2, 32], strides = [1, 1]} : vector<2x128xf32> to vector<2x32xf32>
    %332 = vector.extract_strided_slice %329 {offsets = [0, 64], sizes = [2, 32], strides = [1, 1]} : vector<2x128xf32> to vector<2x32xf32>
    %333 = vector.extract_strided_slice %328 {offsets = [0, 96], sizes = [2, 32], strides = [1, 1]} : vector<2x128xf32> to vector<2x32xf32>
    %334 = arith.mulf %331, %317 : vector<2x32xf32>
    %335 = arith.mulf %330, %332 : vector<2x32xf32>
    %336 = arith.addf %334, %335 : vector<2x32xf32>
    %337 = math.tanh %336 : vector<2x32xf32>
    %338 = arith.mulf %333, %337 : vector<2x32xf32>
    %c1 = arith.constant 1 : index
    %c0_56 = arith.constant 0 : index
    %c0_57 = arith.constant 0 : index
    %339 = vector.load %arg10[%c1, %c0_56, %c0_57] : memref<2x2x32xf32, #tpu.memory_space<vmem>>, vector<1x2x32xf32>
    %340 = vector.shape_cast %339 : vector<1x2x32xf32> to vector<2x32xf32>
    %341 = vector.shape_cast %338 : vector<2x32xf32> to vector<1x2x32xf32>
    tpu.vector_store %arg10[%c1, %c0_56, %c0_57], %341 {strides = array<i32>} : memref<2x2x32xf32, #tpu.memory_space<vmem>>, vector<1x2x32xf32>,
    %c1_58 = arith.constant 1 : index
    %c0_59 = arith.constant 0 : index
    %c0_60 = arith.constant 0 : index
    %342 = vector.load %arg11[%c1_58, %c0_59, %c0_60] : memref<2x2x32xf32, #tpu.memory_space<vmem>>, vector<1x2x32xf32>
    %343 = vector.shape_cast %342 : vector<1x2x32xf32> to vector<2x32xf32>
    %344 = vector.shape_cast %336 : vector<2x32xf32> to vector<1x2x32xf32>
    tpu.vector_store %arg11[%c1_58, %c0_59, %c0_60], %344 {strides = array<i32>} : memref<2x2x32xf32, #tpu.memory_space<vmem>>, vector<1x2x32xf32>,
    %345 = vector.shape_cast %205 : vector<2x32xf32> to vector<2x1x32xf32>
    %346 = vector.shape_cast %224 : vector<2x32xf32> to vector<2x1x32xf32>
    %347 = vector.shape_cast %243 : vector<2x32xf32> to vector<2x1x32xf32>
    %348 = vector.shape_cast %262 : vector<2x32xf32> to vector<2x1x32xf32>
    %349 = vector.shape_cast %281 : vector<2x32xf32> to vector<2x1x32xf32>
    %350 = vector.shape_cast %300 : vector<2x32xf32> to vector<2x1x32xf32>
    %351 = vector.shape_cast %319 : vector<2x32xf32> to vector<2x1x32xf32>
    %352 = vector.shape_cast %338 : vector<2x32xf32> to vector<2x1x32xf32>
    %353 = tpu.concatenate %345, %346, %347, %348, %349, %350, %351, %352 in 1 : vector<2x1x32xf32>, vector<2x1x32xf32>, vector<2x1x32xf32>, vector<2x1x32xf32>, vector<2x1x32xf32>, vector<2x1x32xf32>, vector<2x1x32xf32>, vector<2x1x32xf32> -> vector<2x8x32xf32>
    %354 = vector.shape_cast %353 : vector<2x8x32xf32> to vector<16x32xf32>
    %c0_61 = arith.constant 0 : index
    %c0_62 = arith.constant 0 : index
    %355 = vector.load %arg7[%c0_61, %c0_62] : memref<32x128xf32, #tpu.memory_space<vmem>>, vector<32x128xf32>
    %cst_63 = arith.constant dense<0.000000e+00> : vector<16x128xf32>
    %356 = tpu.matmul %354, %355, %cst_63 {dimension_numbers = #tpu.dot_dimension_numbers<[1], [0], [0], [1], [0, 0, 1, 1], [], []>} : vector<16x32xf32>, vector<32x128xf32>, vector<16x128xf32> -> vector<16x128xf32>
    %c0_64 = arith.constant 0 : index
    %c0_65 = arith.constant 0 : index
    %357 = vector.load %arg8[%c0_64, %c0_65] : memref<1x128xf32, #tpu.memory_space<vmem>>, vector<1x128xf32>
    %358 = vector.broadcast %357 : vector<1x128xf32> to vector<16x128xf32>
    %359 = arith.addf %356, %358 : vector<16x128xf32>
    %360 = arith.negf %359 : vector<16x128xf32>
    %361 = math.exp %360 : vector<16x128xf32>
    %cst_66 = arith.constant 1.000000e+00 : f32
    %362 = vector.broadcast %cst_66 : f32 to vector<16x128xf32>
    %363 = arith.addf %362, %361 : vector<16x128xf32>
    %364 = arith.divf %362, %363 : vector<16x128xf32>
    %c0_67 = arith.constant 0 : index
    %c0_68 = arith.constant 0 : index
    %365 = vector.load %arg9[%c0_67, %c0_68] : memref<16x128xf32, #tpu.memory_space<vmem>>, vector<16x128xf32>
    tpu.vector_store %arg9[%c0_67, %c0_68], %364 {strides = array<i32>} : memref<16x128xf32, #tpu.memory_space<vmem>>, vector<16x128xf32>,
    return
  }
}

</mosaic_0001>

<llo_original>
// kernel: base_teacher_force_forward.1
$region0: #{base_teacher_force_forward.1}
  #allocation0 [shape = 'u32[]', space=smem, size = 0x4, offset = 0x4, fixed_abs, tag = 'smem constant byte address 0x4 - core index']
  #allocation1 [shape = 'u32[72,128]{1,0:T(1,128)}', space=vmem, size = 0x9000, scoped, tag = 'internal scratch']
  %s0 = inlined_call_operand.vmem [shape: f32[16,32], index: 0, kind: input, shape index: {}]
  %s1 = inlined_call_operand.vmem [shape: f32[32,128], index: 1, kind: input, shape index: {}]
  %s2 = inlined_call_operand.vmem [shape: f32[32,128], index: 2, kind: input, shape index: {}]
  %s3 = inlined_call_operand.vmem [shape: f32[1,128], index: 3, kind: input, shape index: {}]
  %s4 = inlined_call_operand.hbm [shape: f32[32,128], index: 4, kind: input, shape index: {}]
  %s5 = inlined_call_operand.hbm [shape: f32[32,128], index: 5, kind: input, shape index: {}]
  %s6 = inlined_call_operand.vmem [shape: f32[1,128], index: 6, kind: input, shape index: {}]
  %s7 = inlined_call_operand.hbm [shape: f32[32,128], index: 7, kind: input, shape index: {}]
  %s8 = inlined_call_operand.hbm [shape: f32[1,128], index: 8, kind: input, shape index: {}]
  %s9 = inlined_call_operand.hbm [shape: f32[16,128], index: 9, kind: output, shape index: {0}]
  %s10 = inlined_call_operand.hbm [shape: f32[2,2,32], index: 10, kind: output, shape index: {1}]
  %s11 = inlined_call_operand.hbm [shape: f32[2,2,32], index: 11, kind: output, shape index: {2}]
  %12 = xla_tuple %s9, %s10, %s11
  %s13 = sld [smem:[#allocation0]]
  $region78: #{base_teacher_force_forward.1} parent=0
    _
  %s15 = ssub.s32 1, %s13
  %s16 = scalar_select 0, %s15, %s13
  $region1: #{base_teacher_force_forward.1} parent=0
    #allocation2 [shape = 'u8[16384]{0}', space=vmem, size = 0x4000, scoped, tag = 'input window, operand 4, single buffered']
    #allocation3 [shape = 's32[1]{0}', space=sflag, size = 0x4, scoped, tag = 'scoped memory for base_teacher_force_forward.1']
    #allocation4 [shape = 's32[1]{0}', space=sflag, size = 0x4, scoped, tag = 'scoped memory for base_teacher_force_forward.1']
    #allocation5 [shape = 'u8[16384]{0}', space=vmem, size = 0x4000, scoped, tag = 'input window, operand 5, single buffered']
    #allocation6 [shape = 's32[1]{0}', space=sflag, size = 0x4, scoped, tag = 'scoped memory for base_teacher_force_forward.1']
    #allocation7 [shape = 'u8[16384]{0}', space=vmem, size = 0x4000, scoped, tag = 'input window, operand 7, single buffered']
    #allocation8 [shape = 'u8[512]{0}', space=vmem, size = 0x400, scoped, tag = 'input window, operand 8, single buffered']
    #allocation9 [shape = 's32[1]{0}', space=sflag, size = 0x4, scoped, tag = 'scoped memory for base_teacher_force_forward.1']
    #allocation10 [shape = 'u8[8192]{0}', space=vmem, size = 0x2000, scoped, tag = 'output window, operand 0, single buffered']
    #allocation11 [shape = 'u8[2048]{0}', space=vmem, size = 0x800, scoped, tag = 'output window, operand 1, single buffered']
    #allocation12 [shape = 's32[1]{0}', space=sflag, size = 0x4, scoped, tag = 'scoped memory for base_teacher_force_forward.1']
    #allocation13 [shape = 'u8[2048]{0}', space=vmem, size = 0x800, scoped, tag = 'output window, operand 2, single buffered']
    %17 = vsyncpa [#allocation3], 0
    %18 = vsyncpa [#allocation6], 0
    %19 = vsyncpa [#allocation9], 0
    %20 = vsyncpa [#allocation4], 0
    %21 = vsyncpa [#allocation12], 0
    // Predicated region
    $region2: #{base_teacher_force_forward.1} parent=1 // pred_check
      _
    $region3: #{base_teacher_force_forward.1} parent=1 // pred_check_branch
      %23 = sbr.rel (0) target = $region5
    $region4: #{base_teacher_force_forward.1} parent=1 // pred_region
      _
    $region5: #{base_teacher_force_forward.1} parent=1 // pred_fallthru
      _
    // Predicated region
    $region6: #{base_teacher_force_forward.1} parent=1 // pred_check
      _
    $region7: #{base_teacher_force_forward.1} parent=1 // pred_check_branch
      %25 = sbr.rel (0) target = $region9
    $region8: #{base_teacher_force_forward.1} parent=1 // pred_region
      _
    $region9: #{base_teacher_force_forward.1} parent=1 // pred_fallthru
      _
    // Predicated region
    $region10: #{base_teacher_force_forward.1} parent=1 // pred_check
      _
    $region11: #{base_teacher_force_forward.1} parent=1 // pred_check_branch
      %27 = sbr.rel (0) target = $region13
    $region12: #{base_teacher_force_forward.1} parent=1 // pred_region
      _
    $region13: #{base_teacher_force_forward.1} parent=1 // pred_fallthru
      _
    // Predicated region
    $region14: #{base_teacher_force_forward.1} parent=1 // pred_check
      _
    $region15: #{base_teacher_force_forward.1} parent=1 // pred_check_branch
      %29 = sbr.rel (0) target = $region17
    $region16: #{base_teacher_force_forward.1} parent=1 // pred_region
      _
    $region17: #{base_teacher_force_forward.1} parent=1 // pred_fallthru
      _
    // Predicated region
    $region18: #{base_teacher_force_forward.1} parent=1 // pred_check
      _
    $region19: #{base_teacher_force_forward.1} parent=1 // pred_check_branch
      %31 = sbr.rel (0) target = $region21
    $region20: #{base_teacher_force_forward.1} parent=1 // pred_region
      %33 = vsyncadd [#allocation3], 0
      %s34 = sshll.u32 %s4, 4
      %s35 = int_to_ptr.hbm [resolvable:$true] %s34
      %s36 = sshll.u32 [#allocation2], 4
      %s37 = int_to_ptr.vmem [resolvable:$true] %s36
      %42 = dma.hbm_to_vmem [thread:$0]  %s35, 512, %s37, [#allocation3], 128, 128, 8
    $region21: #{base_teacher_force_forward.1} parent=1 // pred_fallthru
      _
    // Predicated region
    $region22: #{base_teacher_force_forward.1} parent=1 // pred_check
      _
    $region23: #{base_teacher_force_forward.1} parent=1 // pred_check_branch
      %44 = sbr.rel (0) target = $region25
    $region24: #{base_teacher_force_forward.1} parent=1 // pred_region
      %46 = vsyncadd [#allocation6], 0
      %s47 = sshll.u32 %s5, 4
      %s48 = int_to_ptr.hbm [resolvable:$true] %s47
      %s49 = sshll.u32 [#allocation5], 4
      %s50 = int_to_ptr.vmem [resolvable:$true] %s49
      %55 = dma.hbm_to_vmem [thread:$0]  %s48, 512, %s50, [#allocation6], 128, 128, 8
    $region25: #{base_teacher_force_forward.1} parent=1 // pred_fallthru
      _
    // Predicated region
    $region26: #{base_teacher_force_forward.1} parent=1 // pred_check
      _
    $region27: #{base_teacher_force_forward.1} parent=1 // pred_check_branch
      %57 = sbr.rel (0) target = $region29
    $region28: #{base_teacher_force_forward.1} parent=1 // pred_region
      _
    $region29: #{base_teacher_force_forward.1} parent=1 // pred_fallthru
      _
    // Predicated region
    $region30: #{base_teacher_force_forward.1} parent=1 // pred_check
      _
    $region31: #{base_teacher_force_forward.1} parent=1 // pred_check_branch
      %59 = sbr.rel (0) target = $region33
    $region32: #{base_teacher_force_forward.1} parent=1 // pred_region
      %61 = vsyncadd [#allocation6], 0
      %s62 = sshll.u32 %s7, 4
      %s63 = int_to_ptr.hbm [resolvable:$true] %s62
      %s64 = sshll.u32 [#allocation7], 4
      %s65 = int_to_ptr.vmem [resolvable:$true] %s64
      %70 = dma.hbm_to_vmem [thread:$0]  %s63, 512, %s65, [#allocation6], 128, 128, 8
    $region33: #{base_teacher_force_forward.1} parent=1 // pred_fallthru
      _
    // Predicated region
    $region34: #{base_teacher_force_forward.1} parent=1 // pred_check
      _
    $region35: #{base_teacher_force_forward.1} parent=1 // pred_check_branch
      %72 = sbr.rel (0) target = $region37
    $region36: #{base_teacher_force_forward.1} parent=1 // pred_region
      %74 = vsyncadd [#allocation9], 0
      %s76 = sshll.u32 %s8, 4
      %s77 = int_to_ptr.hbm [resolvable:$true] %s76
      %s78 = sshll.u32 [#allocation8], 4
      %s79 = int_to_ptr.vmem [resolvable:$true] %s78
      %81 = dma.hbm_to_vmem [thread:$0]  %s77, 16, %s79, [#allocation9]
    $region37: #{base_teacher_force_forward.1} parent=1 // pred_fallthru
      _
    // Predicated region
    $region38: #{base_teacher_force_forward.1} parent=1 // pred_check
      _
    $region39: #{base_teacher_force_forward.1} parent=1 // pred_check_branch
      %83 = sbr.rel (0) target = $region41
    $region40: #{base_teacher_force_forward.1} parent=1 // pred_region
      %85 = dma.done [#allocation3], 512
    $region41: #{base_teacher_force_forward.1} parent=1 // pred_fallthru
      _
    // Predicated region
    $region42: #{base_teacher_force_forward.1} parent=1 // pred_check
      _
    $region43: #{base_teacher_force_forward.1} parent=1 // pred_check_branch
      %87 = sbr.rel (0) target = $region45
    $region44: #{base_teacher_force_forward.1} parent=1 // pred_region
      %89 = dma.done [#allocation6], 512
    $region45: #{base_teacher_force_forward.1} parent=1 // pred_fallthru
      _
    // Predicated region
    $region46: #{base_teacher_force_forward.1} parent=1 // pred_check
      _
    $region47: #{base_teacher_force_forward.1} parent=1 // pred_check_branch
      %91 = sbr.rel (0) target = $region49
    $region48: #{base_teacher_force_forward.1} parent=1 // pred_region
      %93 = dma.done [#allocation6], 512
    $region49: #{base_teacher_force_forward.1} parent=1 // pred_fallthru
      _
    // Predicated region
    $region50: #{base_teacher_force_forward.1} parent=1 // pred_check
      _
    $region51: #{base_teacher_force_forward.1} parent=1 // pred_check_branch
      %95 = sbr.rel (0) target = $region53
    $region52: #{base_teacher_force_forward.1} parent=1 // pred_region
      %97 = dma.done [#allocation9], 16
    $region53: #{base_teacher_force_forward.1} parent=1 // pred_fallthru
      _
    %v98 = vld [vmem:[%s0] sm:$0xff]
    %v99 = vld [vmem:[%s0 + $0x8] sm:$0xff]
    %v100 = vld [vmem:[%s1] sm:$0xff]
    %v101 = vld [vmem:[%s1 + $0x8] sm:$0xff]
    %v102 = vld [vmem:[%s1 + $0x10] sm:$0xff]
    %v103 = vld [vmem:[%s1 + $0x18] sm:$0xff]
    %v104 = vld [vmem:[%s2] sm:$0xff]
    %v105 = vld [vmem:[%s2 + $0x8] sm:$0xff]
    %v106 = vld [vmem:[%s2 + $0x10] sm:$0xff]
    %v107 = vld [vmem:[%s2 + $0x18] sm:$0xff]
    %v108 = vld [vmem:[%s3] sm:$0x1]
    %v110 = vperm.slane %v108, 0
    %vm112 = vcmask 261120
    %v114 = vsel %vm112, %v98, 0
    %v117 = vsel %vm112, %v99, 0
    %119 = vmatpush.msra.mxu0 0.0
    %120 = vmatpush.msra.mxu0 0.0
    %121 = vmatpush.msra.mxu0 0.0
    %122 = vmatpush.msra.mxu0 0.0
    %123 = vmatpush.msra.mxu0 0.0
    %124 = vmatpush.msra.mxu0 0.0
    %125 = vmatpush.msra.mxu0 0.0
    %126 = vmatpush.msra.mxu0 0.0
    %127 = vmatpush.msra.mxu0 0.0
    %128 = vmatpush.msra.mxu0 0.0
    %129 = vmatpush.msra.mxu0 0.0
    %130 = vmatpush.msra.mxu0 0.0
    %131 = vmatpush.msra.mxu0 %v103
    %132 = vmatpush.msra.mxu0 %v102
    %133 = vmatpush.msra.mxu0 %v101
    %134 = vmatpush.msra.mxu0 %v100
    %135 = vmatmul.f32.gmra.mxu0 %v114
    %v136 = vpop.f32.mrf.mxu0
    %v137 = vadd.f32 %v110, %v136
    %138 = vmatmul.f32.gmra.mxu0 %v117
    %v139 = vpop.f32.mrf.mxu0
    %v140 = vadd.f32 %v110, %v139
    %141 = vdwg.mxu0
    %v143 = vsel %vm112, 0.0, 0
    %145 = vmatpush.msra.mxu0 0.0
    %146 = vmatpush.msra.mxu0 0.0
    %147 = vmatpush.msra.mxu0 0.0
    %148 = vmatpush.msra.mxu0 0.0
    %149 = vmatpush.msra.mxu0 0.0
    %150 = vmatpush.msra.mxu0 0.0
    %151 = vmatpush.msra.mxu0 0.0
    %152 = vmatpush.msra.mxu0 0.0
    %153 = vmatpush.msra.mxu0 0.0
    %154 = vmatpush.msra.mxu0 0.0
    %155 = vmatpush.msra.mxu0 0.0
    %156 = vmatpush.msra.mxu0 0.0
    %157 = vmatpush.msra.mxu0 %v107
    %158 = vmatpush.msra.mxu0 %v106
    %159 = vmatpush.msra.mxu0 %v105
    %160 = vmatpush.msra.mxu0 %v104
    %161 = vmatmul.f32.gmra.mxu0 %v143
    %v162 = vpop.f32.mrf.mxu0
    %v163 = vadd.f32 0.0, %v162
    %164 = vdwg.mxu0
    %v166 = vrot.slane %v163, 1
    %v169 = vadd.f32 %v137, %v163
    %v170 = vadd.f32 %v140, %v166
    %v171 = vxor.u32 %v169, 2147483648
    %v172 = vxor.u32 %v170, 2147483648
    %v173 = vmul.f32 %v171, 1.442695
    %v174 = vpow.pop %v173
    %v175 = vmul.f32 %v172, 1.442695
    %v176 = vpow.pop %v175
    %v177 = vadd.f32 %v174, 1.0
    %v178 = vadd.f32 %v176, 1.0
    %v179 = vrcp.pop %v177
    %v180 = vmul.f32 %v177, %v179
    %v181 = vsub.f32 1.0, %v180
    %v182 = vmul.f32 %v179, %v181
    %v183 = vadd.f32 %v179, %v182
    %vm184 = vweird.f32 %v177
    %vm185 = vweird.f32 %v179
    %vm186 = vmor %vm184, %vm185
    %v187 = vsel %vm186, %v179, %v183
    %v188 = vand.u32 2147483647, %v177
    %vm189 = vcmp.eq.f32.partialorder %v188, 8.507059e+37
    %v190 = vand.u32 %v177, 2147483648
    %v191 = vor.u32 1.1754944e-38, %v190
    %v192 = vsel %vm189, %v191, %v187
    %v193 = vmul.f32 1.0, %v192
    %v194 = vrcp.pop %v178
    %v195 = vmul.f32 %v178, %v194
    %v196 = vsub.f32 1.0, %v195
    %v197 = vmul.f32 %v194, %v196
    %v198 = vadd.f32 %v194, %v197
    %vm199 = vweird.f32 %v178
    %vm200 = vweird.f32 %v194
    %vm201 = vmor %vm199, %vm200
    %v202 = vsel %vm201, %v194, %v198
    %v203 = vand.u32 2147483647, %v178
    %vm204 = vcmp.eq.f32.partialorder %v203, 8.507059e+37
    %v205 = vand.u32 %v178, 2147483648
    %v206 = vor.u32 1.1754944e-38, %v205
    %v207 = vsel %vm204, %v206, %v202
    %v208 = vmul.f32 1.0, %v207
    %v209 = vtanh.pop %v169
    %v210 = vtanh.pop %v170
    %v211 = vmul.f32 %v193, 0.0
    %v212 = vmul.f32 %v208, 0.0
    %215 = vrot.lane.b32.xlu0 %v209, 64
    %v216 = vpop.permute.xlu0 %215
    %217 = vrot.lane.b32.xlu0 %v210, 64
    %v218 = vpop.permute.xlu0 %217
    %v221 = vmul.f32 %v193, %v216
    %v222 = vmul.f32 %v208, %v218
    %225 = vrot.lane.b32.xlu0 %v221, 32
    %v226 = vpop.permute.xlu0 %225
    %227 = vrot.lane.b32.xlu0 %v222, 32
    %v228 = vpop.permute.xlu0 %227
    %v231 = vadd.f32 %v211, %v226
    %v232 = vadd.f32 %v212, %v228
    %v233 = vtanh.pop %v231
    %v234 = vtanh.pop %v232
    %237 = vrot.lane.b32.xlu0 %v233, 64
    %v238 = vpop.permute.xlu0 %237
    %239 = vrot.lane.b32.xlu0 %v234, 64
    %v240 = vpop.permute.xlu0 %239
    %v243 = vmul.f32 %v193, %v238
    %v244 = vmul.f32 %v208, %v240
    %v247 = vrot.slane %v244, 7
    %vm248 = vcmask 1041409
    %v249 = vsel %vm248, %v247, %v243
    %250 = vrot.lane.b32.xlu0 %v249, 32
    %v251 = vpop.permute.xlu0 %250
    %v252 = vsel %vm112, %v251, 0
    %254 = vmatpush.msra.mxu0 0.0
    %255 = vmatpush.msra.mxu0 0.0
    %256 = vmatpush.msra.mxu0 0.0
    %257 = vmatpush.msra.mxu0 0.0
    %258 = vmatpush.msra.mxu0 0.0
    %259 = vmatpush.msra.mxu0 0.0
    %260 = vmatpush.msra.mxu0 0.0
    %261 = vmatpush.msra.mxu0 0.0
    %262 = vmatpush.msra.mxu0 0.0
    %263 = vmatpush.msra.mxu0 0.0
    %264 = vmatpush.msra.mxu0 0.0
    %265 = vmatpush.msra.mxu0 0.0
    %266 = vmatpush.msra.mxu0 %v107
    %267 = vmatpush.msra.mxu0 %v106
    %268 = vmatpush.msra.mxu0 %v105
    %269 = vmatpush.msra.mxu0 %v104
    %270 = vmatmul.f32.gmra.mxu0 %v252
    %v271 = vpop.f32.mrf.mxu0
    %v272 = vadd.f32 0.0, %v271
    %273 = vdwg.mxu0
    %v275 = vrot.slane %v272, 7
    %v278 = vadd.f32 %v137, %v275
    %v279 = vadd.f32 %v140, %v272
    %v280 = vxor.u32 %v278, 2147483648
    %v281 = vxor.u32 %v279, 2147483648
    %v282 = vmul.f32 %v280, 1.442695
    %v283 = vpow.pop %v282
    %v284 = vmul.f32 %v281, 1.442695
    %v285 = vpow.pop %v284
    %v286 = vadd.f32 %v283, 1.0
    %v287 = vadd.f32 %v285, 1.0
    %v288 = vrcp.pop %v286
    %v289 = vmul.f32 %v286, %v288
    %v290 = vsub.f32 1.0, %v289
    %v291 = vmul.f32 %v288, %v290
    %v292 = vadd.f32 %v288, %v291
    %vm293 = vweird.f32 %v286
    %vm294 = vweird.f32 %v288
    %vm295 = vmor %vm293, %vm294
    %v296 = vsel %vm295, %v288, %v292
    %v297 = vand.u32 2147483647, %v286
    %vm298 = vcmp.eq.f32.partialorder %v297, 8.507059e+37
    %v299 = vand.u32 %v286, 2147483648
    %v300 = vor.u32 1.1754944e-38, %v299
    %v301 = vsel %vm298, %v300, %v296
    %v302 = vmul.f32 1.0, %v301
    %v303 = vrcp.pop %v287
    %v304 = vmul.f32 %v287, %v303
    %v305 = vsub.f32 1.0, %v304
    %v306 = vmul.f32 %v303, %v305
    %v307 = vadd.f32 %v303, %v306
    %vm308 = vweird.f32 %v287
    %vm309 = vweird.f32 %v303
    %vm310 = vmor %vm308, %vm309
    %v311 = vsel %vm310, %v303, %v307
    %v312 = vand.u32 2147483647, %v287
    %vm313 = vcmp.eq.f32.partialorder %v312, 8.507059e+37
    %v314 = vand.u32 %v287, 2147483648
    %v315 = vor.u32 1.1754944e-38, %v314
    %v316 = vsel %vm313, %v315, %v311
    %v317 = vmul.f32 1.0, %v316
    %v318 = vtanh.pop %v278
    %v319 = vtanh.pop %v279
    %v322 = vrot.slane %v231, 7
    %v323 = vrot.slane %v232, 7
    %v326 = vmul.f32 %v302, %v322
    %v327 = vmul.f32 %v317, %v323
    %330 = vrot.lane.b32.xlu0 %v318, 64
    %v331 = vpop.permute.xlu0 %330
    %332 = vrot.lane.b32.xlu0 %v319, 64
    %v333 = vpop.permute.xlu0 %332
    %v336 = vmul.f32 %v302, %v331
    %v337 = vmul.f32 %v317, %v333
    %340 = vrot.lane.b32.xlu0 %v336, 32
    %v341 = vpop.permute.xlu0 %340
    %342 = vrot.lane.b32.xlu0 %v337, 32
    %v343 = vpop.permute.xlu0 %342
    %v346 = vadd.f32 %v326, %v341
    %v347 = vadd.f32 %v327, %v343
    %v348 = vtanh.pop %v346
    %v349 = vtanh.pop %v347
    %352 = vrot.lane.b32.xlu0 %v348, 64
    %v353 = vpop.permute.xlu0 %352
    %354 = vrot.lane.b32.xlu0 %v349, 64
    %v355 = vpop.permute.xlu0 %354
    %v358 = vmul.f32 %v302, %v353
    %v359 = vmul.f32 %v317, %v355
    %v362 = vrot.slane %v358, 1
    %v363 = vsel %vm248, %v359, %v362
    %364 = vrot.lane.b32.xlu0 %v363, 32
    %v365 = vpop.permute.xlu0 %364
    %v366 = vsel %vm112, %v365, 0
    %368 = vmatpush.msra.mxu0 0.0
    %369 = vmatpush.msra.mxu0 0.0
    %370 = vmatpush.msra.mxu0 0.0
    %371 = vmatpush.msra.mxu0 0.0
    %372 = vmatpush.msra.mxu0 0.0
    %373 = vmatpush.msra.mxu0 0.0
    %374 = vmatpush.msra.mxu0 0.0
    %375 = vmatpush.msra.mxu0 0.0
    %376 = vmatpush.msra.mxu0 0.0
    %377 = vmatpush.msra.mxu0 0.0
    %378 = vmatpush.msra.mxu0 0.0
    %379 = vmatpush.msra.mxu0 0.0
    %380 = vmatpush.msra.mxu0 %v107
    %381 = vmatpush.msra.mxu0 %v106
    %382 = vmatpush.msra.mxu0 %v105
    %383 = vmatpush.msra.mxu0 %v104
    %384 = vmatmul.f32.gmra.mxu0 %v366
    %v385 = vpop.f32.mrf.mxu0
    %v386 = vadd.f32 0.0, %v385
    %387 = vdwg.mxu0
    %v389 = vrot.slane %v386, 6
    %v390 = vrot.slane %v386, 7
    %v393 = vadd.f32 %v137, %v389
    %v394 = vadd.f32 %v140, %v390
    %v395 = vxor.u32 %v393, 2147483648
    %v396 = vxor.u32 %v394, 2147483648
    %v397 = vmul.f32 %v395, 1.442695
    %v398 = vpow.pop %v397
    %v399 = vmul.f32 %v396, 1.442695
    %v400 = vpow.pop %v399
    %v401 = vadd.f32 %v398, 1.0
    %v402 = vadd.f32 %v400, 1.0
    %v403 = vrcp.pop %v401
    %v404 = vmul.f32 %v401, %v403
    %v405 = vsub.f32 1.0, %v404
    %v406 = vmul.f32 %v403, %v405
    %v407 = vadd.f32 %v403, %v406
    %vm408 = vweird.f32 %v401
    %vm409 = vweird.f32 %v403
    %vm410 = vmor %vm408, %vm409
    %v411 = vsel %vm410, %v403, %v407
    %v412 = vand.u32 2147483647, %v401
    %vm413 = vcmp.eq.f32.partialorder %v412, 8.507059e+37
    %v414 = vand.u32 %v401, 2147483648
    %v415 = vor.u32 1.1754944e-38, %v414
    %v416 = vsel %vm413, %v415, %v411
    %v417 = vmul.f32 1.0, %v416
    %v418 = vrcp.pop %v402
    %v419 = vmul.f32 %v402, %v418
    %v420 = vsub.f32 1.0, %v419
    %v421 = vmul.f32 %v418, %v420
    %v422 = vadd.f32 %v418, %v421
    %vm423 = vweird.f32 %v402
    %vm424 = vweird.f32 %v418
    %vm425 = vmor %vm423, %vm424
    %v426 = vsel %vm425, %v418, %v422
    %v427 = vand.u32 2147483647, %v402
    %vm428 = vcmp.eq.f32.partialorder %v427, 8.507059e+37
    %v429 = vand.u32 %v402, 2147483648
    %v430 = vor.u32 1.1754944e-38, %v429
    %v431 = vsel %vm428, %v430, %v426
    %v432 = vmul.f32 1.0, %v431
    %v433 = vtanh.pop %v393
    %v434 = vtanh.pop %v394
    %v437 = vrot.slane %v346, 7
    %v438 = vrot.slane %v347, 7
    %v441 = vmul.f32 %v417, %v437
    %v442 = vmul.f32 %v432, %v438
    %445 = vrot.lane.b32.xlu0 %v433, 64
    %v446 = vpop.permute.xlu0 %445
    %447 = vrot.lane.b32.xlu0 %v434, 64
    %v448 = vpop.permute.xlu0 %447
    %v451 = vmul.f32 %v417, %v446
    %v452 = vmul.f32 %v432, %v448
    %455 = vrot.lane.b32.xlu0 %v451, 32
    %v456 = vpop.permute.xlu0 %455
    %457 = vrot.lane.b32.xlu0 %v452, 32
    %v458 = vpop.permute.xlu0 %457
    %v461 = vadd.f32 %v441, %v456
    %v462 = vadd.f32 %v442, %v458
    %v463 = vtanh.pop %v461
    %v464 = vtanh.pop %v462
    %467 = vrot.lane.b32.xlu0 %v463, 64
    %v468 = vpop.permute.xlu0 %467
    %469 = vrot.lane.b32.xlu0 %v464, 64
    %v470 = vpop.permute.xlu0 %469
    %v473 = vmul.f32 %v417, %v468
    %v474 = vmul.f32 %v432, %v470
    %v477 = vrot.slane %v473, 2
    %v478 = vrot.slane %v474, 1
    %v479 = vsel %vm248, %v478, %v477
    %480 = vrot.lane.b32.xlu0 %v479, 32
    %v481 = vpop.permute.xlu0 %480
    %v482 = vsel %vm112, %v481, 0
    %484 = vmatpush.msra.mxu0 0.0
    %485 = vmatpush.msra.mxu0 0.0
    %486 = vmatpush.msra.mxu0 0.0
    %487 = vmatpush.msra.mxu0 0.0
    %488 = vmatpush.msra.mxu0 0.0
    %489 = vmatpush.msra.mxu0 0.0
    %490 = vmatpush.msra.mxu0 0.0
    %491 = vmatpush.msra.mxu0 0.0
    %492 = vmatpush.msra.mxu0 0.0
    %493 = vmatpush.msra.mxu0 0.0
    %494 = vmatpush.msra.mxu0 0.0
    %495 = vmatpush.msra.mxu0 0.0
    %496 = vmatpush.msra.mxu0 %v107
    %497 = vmatpush.msra.mxu0 %v106
    %498 = vmatpush.msra.mxu0 %v105
    %499 = vmatpush.msra.mxu0 %v104
    %500 = vmatmul.f32.gmra.mxu0 %v482
    %v501 = vpop.f32.mrf.mxu0
    %v502 = vadd.f32 0.0, %v501
    %503 = vdwg.mxu0
    %v505 = vrot.slane %v502, 5
    %v506 = vrot.slane %v502, 6
    %v509 = vadd.f32 %v137, %v505
    %v510 = vadd.f32 %v140, %v506
    %v511 = vxor.u32 %v509, 2147483648
    %v512 = vxor.u32 %v510, 2147483648
    %v513 = vmul.f32 %v511, 1.442695
    %v514 = vpow.pop %v513
    %v515 = vmul.f32 %v512, 1.442695
    %v516 = vpow.pop %v515
    %v517 = vadd.f32 %v514, 1.0
    %v518 = vadd.f32 %v516, 1.0
    %v519 = vrcp.pop %v517
    %v520 = vmul.f32 %v517, %v519
    %v521 = vsub.f32 1.0, %v520
    %v522 = vmul.f32 %v519, %v521
    %v523 = vadd.f32 %v519, %v522
    %vm524 = vweird.f32 %v517
    %vm525 = vweird.f32 %v519
    %vm526 = vmor %vm524, %vm525
    %v527 = vsel %vm526, %v519, %v523
    %v528 = vand.u32 2147483647, %v517
    %vm529 = vcmp.eq.f32.partialorder %v528, 8.507059e+37
    %v530 = vand.u32 %v517, 2147483648
    %v531 = vor.u32 1.1754944e-38, %v530
    %v532 = vsel %vm529, %v531, %v527
    %v533 = vmul.f32 1.0, %v532
    %v534 = vrcp.pop %v518
    %v535 = vmul.f32 %v518, %v534
    %v536 = vsub.f32 1.0, %v535
    %v537 = vmul.f32 %v534, %v536
    %v538 = vadd.f32 %v534, %v537
    %vm539 = vweird.f32 %v518
    %vm540 = vweird.f32 %v534
    %vm541 = vmor %vm539, %vm540
    %v542 = vsel %vm541, %v534, %v538
    %v543 = vand.u32 2147483647, %v518
    %vm544 = vcmp.eq.f32.partialorder %v543, 8.507059e+37
    %v545 = vand.u32 %v518, 2147483648
    %v546 = vor.u32 1.1754944e-38, %v545
    %v547 = vsel %vm544, %v546, %v542
    %v548 = vmul.f32 1.0, %v547
    %v549 = vtanh.pop %v509
    %v550 = vtanh.pop %v510
    %v553 = vrot.slane %v461, 7
    %v554 = vrot.slane %v462, 7
    %v557 = vmul.f32 %v533, %v553
    %v558 = vmul.f32 %v548, %v554
    %561 = vrot.lane.b32.xlu0 %v549, 64
    %v562 = vpop.permute.xlu0 %561
    %563 = vrot.lane.b32.xlu0 %v550, 64
    %v564 = vpop.permute.xlu0 %563
    %v567 = vmul.f32 %v533, %v562
    %v568 = vmul.f32 %v548, %v564
    %571 = vrot.lane.b32.xlu0 %v567, 32
    %v572 = vpop.permute.xlu0 %571
    %573 = vrot.lane.b32.xlu0 %v568, 32
    %v574 = vpop.permute.xlu0 %573
    %v577 = vadd.f32 %v557, %v572
    %v578 = vadd.f32 %v558, %v574
    %v579 = vtanh.pop %v577
    %v580 = vtanh.pop %v578
    %583 = vrot.lane.b32.xlu0 %v579, 64
    %v584 = vpop.permute.xlu0 %583
    %585 = vrot.lane.b32.xlu0 %v580, 64
    %v586 = vpop.permute.xlu0 %585
    %v589 = vmul.f32 %v533, %v584
    %v590 = vmul.f32 %v548, %v586
    %v593 = vrot.slane %v589, 3
    %v594 = vrot.slane %v590, 2
    %v595 = vsel %vm248, %v594, %v593
    %596 = vrot.lane.b32.xlu0 %v595, 32
    %v597 = vpop.permute.xlu0 %596
    %v598 = vsel %vm112, %v597, 0
    %600 = vmatpush.msra.mxu0 0.0
    %601 = vmatpush.msra.mxu0 0.0
    %602 = vmatpush.msra.mxu0 0.0
    %603 = vmatpush.msra.mxu0 0.0
    %604 = vmatpush.msra.mxu0 0.0
    %605 = vmatpush.msra.mxu0 0.0
    %606 = vmatpush.msra.mxu0 0.0
    %607 = vmatpush.msra.mxu0 0.0
    %608 = vmatpush.msra.mxu0 0.0
    %609 = vmatpush.msra.mxu0 0.0
    %610 = vmatpush.msra.mxu0 0.0
    %611 = vmatpush.msra.mxu0 0.0
    %612 = vmatpush.msra.mxu0 %v107
    %613 = vmatpush.msra.mxu0 %v106
    %614 = vmatpush.msra.mxu0 %v105
    %615 = vmatpush.msra.mxu0 %v104
    %616 = vmatmul.f32.gmra.mxu0 %v598
    %v617 = vpop.f32.mrf.mxu0
    %v618 = vadd.f32 0.0, %v617
    %619 = vdwg.mxu0
    %v621 = vrot.slane %v618, 4
    %v622 = vrot.slane %v618, 5
    %v625 = vadd.f32 %v137, %v621
    %v626 = vadd.f32 %v140, %v622
    %v627 = vxor.u32 %v625, 2147483648
    %v628 = vxor.u32 %v626, 2147483648
    %v629 = vmul.f32 %v627, 1.442695
    %v630 = vpow.pop %v629
    %v631 = vmul.f32 %v628, 1.442695
    %v632 = vpow.pop %v631
    %v633 = vadd.f32 %v630, 1.0
    %v634 = vadd.f32 %v632, 1.0
    %v635 = vrcp.pop %v633
    %v636 = vmul.f32 %v633, %v635
    %v637 = vsub.f32 1.0, %v636
    %v638 = vmul.f32 %v635, %v637
    %v639 = vadd.f32 %v635, %v638
    %vm640 = vweird.f32 %v633
    %vm641 = vweird.f32 %v635
    %vm642 = vmor %vm640, %vm641
    %v643 = vsel %vm642, %v635, %v639
    %v644 = vand.u32 2147483647, %v633
    %vm645 = vcmp.eq.f32.partialorder %v644, 8.507059e+37
    %v646 = vand.u32 %v633, 2147483648
    %v647 = vor.u32 1.1754944e-38, %v646
    %v648 = vsel %vm645, %v647, %v643
    %v649 = vmul.f32 1.0, %v648
    %v650 = vrcp.pop %v634
    %v651 = vmul.f32 %v634, %v650
    %v652 = vsub.f32 1.0, %v651
    %v653 = vmul.f32 %v650, %v652
    %v654 = vadd.f32 %v650, %v653
    %vm655 = vweird.f32 %v634
    %vm656 = vweird.f32 %v650
    %vm657 = vmor %vm655, %vm656
    %v658 = vsel %vm657, %v650, %v654
    %v659 = vand.u32 2147483647, %v634
    %vm660 = vcmp.eq.f32.partialorder %v659, 8.507059e+37
    %v661 = vand.u32 %v634, 2147483648
    %v662 = vor.u32 1.1754944e-38, %v661
    %v663 = vsel %vm660, %v662, %v658
    %v664 = vmul.f32 1.0, %v663
    %v665 = vtanh.pop %v625
    %v666 = vtanh.pop %v626
    %v669 = vrot.slane %v577, 7
    %v670 = vrot.slane %v578, 7
    %v673 = vmul.f32 %v649, %v669
    %v674 = vmul.f32 %v664, %v670
    %677 = vrot.lane.b32.xlu0 %v665, 64
    %v678 = vpop.permute.xlu0 %677
    %679 = vrot.lane.b32.xlu0 %v666, 64
    %v680 = vpop.permute.xlu0 %679
    %v683 = vmul.f32 %v649, %v678
    %v684 = vmul.f32 %v664, %v680
    %687 = vrot.lane.b32.xlu0 %v683, 32
    %v688 = vpop.permute.xlu0 %687
    %689 = vrot.lane.b32.xlu0 %v684, 32
    %v690 = vpop.permute.xlu0 %689
    %v693 = vadd.f32 %v673, %v688
    %v694 = vadd.f32 %v674, %v690
    %v695 = vtanh.pop %v693
    %v696 = vtanh.pop %v694
    %699 = vrot.lane.b32.xlu0 %v695, 64
    %v700 = vpop.permute.xlu0 %699
    %701 = vrot.lane.b32.xlu0 %v696, 64
    %v702 = vpop.permute.xlu0 %701
    %v705 = vmul.f32 %v649, %v700
    %v706 = vmul.f32 %v664, %v702
    %v709 = vrot.slane %v705, 4
    %v710 = vrot.slane %v706, 3
    %v711 = vsel %vm248, %v710, %v709
    %712 = vrot.lane.b32.xlu0 %v711, 32
    %v713 = vpop.permute.xlu0 %712
    %v714 = vsel %vm112, %v713, 0
    %716 = vmatpush.msra.mxu0 0.0
    %717 = vmatpush.msra.mxu0 0.0
    %718 = vmatpush.msra.mxu0 0.0
    %719 = vmatpush.msra.mxu0 0.0
    %720 = vmatpush.msra.mxu0 0.0
    %721 = vmatpush.msra.mxu0 0.0
    %722 = vmatpush.msra.mxu0 0.0
    %723 = vmatpush.msra.mxu0 0.0
    %724 = vmatpush.msra.mxu0 0.0
    %725 = vmatpush.msra.mxu0 0.0
    %726 = vmatpush.msra.mxu0 0.0
    %727 = vmatpush.msra.mxu0 0.0
    %728 = vmatpush.msra.mxu0 %v107
    %729 = vmatpush.msra.mxu0 %v106
    %730 = vmatpush.msra.mxu0 %v105
    %731 = vmatpush.msra.mxu0 %v104
    %732 = vmatmul.f32.gmra.mxu0 %v714
    %v733 = vpop.f32.mrf.mxu0
    %v734 = vadd.f32 0.0, %v733
    %735 = vdwg.mxu0
    %v737 = vrot.slane %v734, 3
    %v738 = vrot.slane %v734, 4
    %v741 = vadd.f32 %v137, %v737
    %v742 = vadd.f32 %v140, %v738
    %v743 = vxor.u32 %v741, 2147483648
    %v744 = vxor.u32 %v742, 2147483648
    %v745 = vmul.f32 %v743, 1.442695
    %v746 = vpow.pop %v745
    %v747 = vmul.f32 %v744, 1.442695
    %v748 = vpow.pop %v747
    %v749 = vadd.f32 %v746, 1.0
    %v750 = vadd.f32 %v748, 1.0
    %v751 = vrcp.pop %v749
    %v752 = vmul.f32 %v749, %v751
    %v753 = vsub.f32 1.0, %v752
    %v754 = vmul.f32 %v751, %v753
    %v755 = vadd.f32 %v751, %v754
    %vm756 = vweird.f32 %v749
    %vm757 = vweird.f32 %v751
    %vm758 = vmor %vm756, %vm757
    %v759 = vsel %vm758, %v751, %v755
    %v760 = vand.u32 2147483647, %v749
    %vm761 = vcmp.eq.f32.partialorder %v760, 8.507059e+37
    %v762 = vand.u32 %v749, 2147483648
    %v763 = vor.u32 1.1754944e-38, %v762
    %v764 = vsel %vm761, %v763, %v759
    %v765 = vmul.f32 1.0, %v764
    %v766 = vrcp.pop %v750
    %v767 = vmul.f32 %v750, %v766
    %v768 = vsub.f32 1.0, %v767
    %v769 = vmul.f32 %v766, %v768
    %v770 = vadd.f32 %v766, %v769
    %vm771 = vweird.f32 %v750
    %vm772 = vweird.f32 %v766
    %vm773 = vmor %vm771, %vm772
    %v774 = vsel %vm773, %v766, %v770
    %v775 = vand.u32 2147483647, %v750
    %vm776 = vcmp.eq.f32.partialorder %v775, 8.507059e+37
    %v777 = vand.u32 %v750, 2147483648
    %v778 = vor.u32 1.1754944e-38, %v777
    %v779 = vsel %vm776, %v778, %v774
    %v780 = vmul.f32 1.0, %v779
    %v781 = vtanh.pop %v741
    %v782 = vtanh.pop %v742
    %v785 = vrot.slane %v693, 7
    %v786 = vrot.slane %v694, 7
    %v789 = vmul.f32 %v765, %v785
    %v790 = vmul.f32 %v780, %v786
    %793 = vrot.lane.b32.xlu0 %v781, 64
    %v794 = vpop.permute.xlu0 %793
    %795 = vrot.lane.b32.xlu0 %v782, 64
    %v796 = vpop.permute.xlu0 %795
    %v799 = vmul.f32 %v765, %v794
    %v800 = vmul.f32 %v780, %v796
    %803 = vrot.lane.b32.xlu0 %v799, 32
    %v804 = vpop.permute.xlu0 %803
    %805 = vrot.lane.b32.xlu0 %v800, 32
    %v806 = vpop.permute.xlu0 %805
    %v809 = vadd.f32 %v789, %v804
    %v810 = vadd.f32 %v790, %v806
    %v811 = vtanh.pop %v809
    %v812 = vtanh.pop %v810
    %815 = vrot.lane.b32.xlu0 %v811, 64
    %v816 = vpop.permute.xlu0 %815
    %817 = vrot.lane.b32.xlu0 %v812, 64
    %v818 = vpop.permute.xlu0 %817
    %v821 = vmul.f32 %v765, %v816
    %v822 = vmul.f32 %v780, %v818
    %v825 = vrot.slane %v821, 5
    %v826 = vrot.slane %v822, 4
    %v827 = vsel %vm248, %v826, %v825
    %828 = vrot.lane.b32.xlu0 %v827, 32
    %v829 = vpop.permute.xlu0 %828
    %v830 = vsel %vm112, %v829, 0
    %832 = vmatpush.msra.mxu0 0.0
    %833 = vmatpush.msra.mxu0 0.0
    %834 = vmatpush.msra.mxu0 0.0
    %835 = vmatpush.msra.mxu0 0.0
    %836 = vmatpush.msra.mxu0 0.0
    %837 = vmatpush.msra.mxu0 0.0
    %838 = vmatpush.msra.mxu0 0.0
    %839 = vmatpush.msra.mxu0 0.0
    %840 = vmatpush.msra.mxu0 0.0
    %841 = vmatpush.msra.mxu0 0.0
    %842 = vmatpush.msra.mxu0 0.0
    %843 = vmatpush.msra.mxu0 0.0
    %844 = vmatpush.msra.mxu0 %v107
    %845 = vmatpush.msra.mxu0 %v106
    %846 = vmatpush.msra.mxu0 %v105
    %847 = vmatpush.msra.mxu0 %v104
    %848 = vmatmul.f32.gmra.mxu0 %v830
    %v849 = vpop.f32.mrf.mxu0
    %v850 = vadd.f32 0.0, %v849
    %851 = vdwg.mxu0
    %v853 = vrot.slane %v850, 2
    %v854 = vrot.slane %v850, 3
    %v857 = vadd.f32 %v137, %v853
    %v858 = vadd.f32 %v140, %v854
    %v859 = vxor.u32 %v857, 2147483648
    %v860 = vxor.u32 %v858, 2147483648
    %v861 = vmul.f32 %v859, 1.442695
    %v862 = vpow.pop %v861
    %v863 = vmul.f32 %v860, 1.442695
    %v864 = vpow.pop %v863
    %v865 = vadd.f32 %v862, 1.0
    %v866 = vadd.f32 %v864, 1.0
    %v867 = vrcp.pop %v865
    %v868 = vmul.f32 %v865, %v867
    %v869 = vsub.f32 1.0, %v868
    %v870 = vmul.f32 %v867, %v869
    %v871 = vadd.f32 %v867, %v870
    %vm872 = vweird.f32 %v865
    %vm873 = vweird.f32 %v867
    %vm874 = vmor %vm872, %vm873
    %v875 = vsel %vm874, %v867, %v871
    %v876 = vand.u32 2147483647, %v865
    %vm877 = vcmp.eq.f32.partialorder %v876, 8.507059e+37
    %v878 = vand.u32 %v865, 2147483648
    %v879 = vor.u32 1.1754944e-38, %v878
    %v880 = vsel %vm877, %v879, %v875
    %v881 = vmul.f32 1.0, %v880
    %v882 = vrcp.pop %v866
    %v883 = vmul.f32 %v866, %v882
    %v884 = vsub.f32 1.0, %v883
    %v885 = vmul.f32 %v882, %v884
    %v886 = vadd.f32 %v882, %v885
    %vm887 = vweird.f32 %v866
    %vm888 = vweird.f32 %v882
    %vm889 = vmor %vm887, %vm888
    %v890 = vsel %vm889, %v882, %v886
    %v891 = vand.u32 2147483647, %v866
    %vm892 = vcmp.eq.f32.partialorder %v891, 8.507059e+37
    %v893 = vand.u32 %v866, 2147483648
    %v894 = vor.u32 1.1754944e-38, %v893
    %v895 = vsel %vm892, %v894, %v890
    %v896 = vmul.f32 1.0, %v895
    %v897 = vtanh.pop %v857
    %v898 = vtanh.pop %v858
    %v901 = vrot.slane %v809, 7
    %v902 = vrot.slane %v810, 7
    %v905 = vmul.f32 %v881, %v901
    %v906 = vmul.f32 %v896, %v902
    %909 = vrot.lane.b32.xlu0 %v897, 64
    %v910 = vpop.permute.xlu0 %909
    %911 = vrot.lane.b32.xlu0 %v898, 64
    %v912 = vpop.permute.xlu0 %911
    %v915 = vmul.f32 %v881, %v910
    %v916 = vmul.f32 %v896, %v912
    %919 = vrot.lane.b32.xlu0 %v915, 32
    %v920 = vpop.permute.xlu0 %919
    %921 = vrot.lane.b32.xlu0 %v916, 32
    %v922 = vpop.permute.xlu0 %921
    %v925 = vadd.f32 %v905, %v920
    %v926 = vadd.f32 %v906, %v922
    %v927 = vtanh.pop %v925
    %v928 = vtanh.pop %v926
    %931 = vrot.lane.b32.xlu0 %v927, 64
    %v932 = vpop.permute.xlu0 %931
    %933 = vrot.lane.b32.xlu0 %v928, 64
    %v934 = vpop.permute.xlu0 %933
    %v937 = vmul.f32 %v881, %v932
    %v938 = vmul.f32 %v896, %v934
    %v941 = vrot.slane %v937, 6
    %v942 = vrot.slane %v938, 5
    %v943 = vsel %vm248, %v942, %v941
    %944 = vrot.lane.b32.xlu0 %v943, 32
    %v945 = vpop.permute.xlu0 %944
    %v946 = vsel %vm112, %v945, 0
    %948 = vmatpush.msra.mxu0 0.0
    %949 = vmatpush.msra.mxu0 0.0
    %950 = vmatpush.msra.mxu0 0.0
    %951 = vmatpush.msra.mxu0 0.0
    %952 = vmatpush.msra.mxu0 0.0
    %953 = vmatpush.msra.mxu0 0.0
    %954 = vmatpush.msra.mxu0 0.0
    %955 = vmatpush.msra.mxu0 0.0
    %956 = vmatpush.msra.mxu0 0.0
    %957 = vmatpush.msra.mxu0 0.0
    %958 = vmatpush.msra.mxu0 0.0
    %959 = vmatpush.msra.mxu0 0.0
    %960 = vmatpush.msra.mxu0 %v107
    %961 = vmatpush.msra.mxu0 %v106
    %962 = vmatpush.msra.mxu0 %v105
    %963 = vmatpush.msra.mxu0 %v104
    %964 = vmatmul.f32.gmra.mxu0 %v946
    %v965 = vpop.f32.mrf.mxu0
    %v966 = vadd.f32 0.0, %v965
    %967 = vdwg.mxu0
    %v969 = vrot.slane %v966, 1
    %v970 = vrot.slane %v966, 2
    %v973 = vadd.f32 %v137, %v969
    %v974 = vadd.f32 %v140, %v970
    %v975 = vxor.u32 %v973, 2147483648
    %v976 = vxor.u32 %v974, 2147483648
    %v977 = vmul.f32 %v975, 1.442695
    %v978 = vpow.pop %v977
    %v979 = vmul.f32 %v976, 1.442695
    %v980 = vpow.pop %v979
    %v981 = vadd.f32 %v978, 1.0
    %v982 = vadd.f32 %v980, 1.0
    %v983 = vrcp.pop %v981
    %v984 = vmul.f32 %v981, %v983
    %v985 = vsub.f32 1.0, %v984
    %v986 = vmul.f32 %v983, %v985
    %v987 = vadd.f32 %v983, %v986
    %vm988 = vweird.f32 %v981
    %vm989 = vweird.f32 %v983
    %vm990 = vmor %vm988, %vm989
    %v991 = vsel %vm990, %v983, %v987
    %v992 = vand.u32 2147483647, %v981
    %vm993 = vcmp.eq.f32.partialorder %v992, 8.507059e+37
    %v994 = vand.u32 %v981, 2147483648
    %v995 = vor.u32 1.1754944e-38, %v994
    %v996 = vsel %vm993, %v995, %v991
    %v997 = vmul.f32 1.0, %v996
    %v998 = vrcp.pop %v982
    %v999 = vmul.f32 %v982, %v998
    %v1000 = vsub.f32 1.0, %v999
    %v1001 = vmul.f32 %v998, %v1000
    %v1002 = vadd.f32 %v998, %v1001
    %vm1003 = vweird.f32 %v982
    %vm1004 = vweird.f32 %v998
    %vm1005 = vmor %vm1003, %vm1004
    %v1006 = vsel %vm1005, %v998, %v1002
    %v1007 = vand.u32 2147483647, %v982
    %vm1008 = vcmp.eq.f32.partialorder %v1007, 8.507059e+37
    %v1009 = vand.u32 %v982, 2147483648
    %v1010 = vor.u32 1.1754944e-38, %v1009
    %v1011 = vsel %vm1008, %v1010, %v1006
    %v1012 = vmul.f32 1.0, %v1011
    %v1013 = vtanh.pop %v973
    %v1014 = vtanh.pop %v974
    %v1017 = vrot.slane %v925, 7
    %v1018 = vrot.slane %v926, 7
    %v1021 = vmul.f32 %v997, %v1017
    %v1022 = vmul.f32 %v1012, %v1018
    %1025 = vrot.lane.b32.xlu0 %v1013, 64
    %v1026 = vpop.permute.xlu0 %1025
    %1027 = vrot.lane.b32.xlu0 %v1014, 64
    %v1028 = vpop.permute.xlu0 %1027
    %v1031 = vmul.f32 %v997, %v1026
    %v1032 = vmul.f32 %v1012, %v1028
    %1035 = vrot.lane.b32.xlu0 %v1031, 32
    %v1036 = vpop.permute.xlu0 %1035
    %1037 = vrot.lane.b32.xlu0 %v1032, 32
    %v1038 = vpop.permute.xlu0 %1037
    %v1041 = vadd.f32 %v1021, %v1036
    %v1042 = vadd.f32 %v1022, %v1038
    %v1043 = vtanh.pop %v1041
    %v1044 = vtanh.pop %v1042
    %1047 = vrot.lane.b32.xlu0 %v1043, 64
    %v1048 = vpop.permute.xlu0 %1047
    %1049 = vrot.lane.b32.xlu0 %v1044, 64
    %v1050 = vpop.permute.xlu0 %1049
    %v1053 = vmul.f32 %v997, %v1048
    %v1054 = vmul.f32 %v1012, %v1050
    %v1057 = vrot.slane %v1054, 7
    %1058 = vrot.lane.b32.xlu0 %v1053, 32
    %v1059 = vpop.permute.xlu0 %1058
    %1060 = vrot.lane.b32.xlu0 %v1057, 32
    %v1061 = vpop.permute.xlu0 %1060
    %vm1064 = vcmask 261127
    %1065 = vst.msk [vmem:[#allocation11 - $0x7] sm:$0x80] %vm1064, %v1059
    %vm1066 = vcmask 253952
    %1067 = vst.msk [vmem:[#allocation11 + $0x1] sm:$0x1] %vm1066, %v1061
    %v1070 = vrot.slane %v1042, 7
    %1071 = vrot.lane.b32.xlu0 %v1041, 96
    %v1072 = vpop.permute.xlu0 %1071
    %1073 = vrot.lane.b32.xlu0 %v1070, 96
    %v1074 = vpop.permute.xlu0 %1073
    %1077 = vst.msk [vmem:[#allocation13 - $0x7] sm:$0x80] %vm1064, %v1072
    %1078 = vst.msk [vmem:[#allocation13 + $0x1] sm:$0x1] %vm1066, %v1074
    %vm1079 = vcmask 1040384
    %v1080 = vsel %vm1079, %v243, %v358
    %v1081 = vsel %vm1079, %v244, %v359
    %vm1082 = vcmask 1041408
    %v1083 = vsel %vm1082, %v1080, %v473
    %v1084 = vsel %vm1082, %v1081, %v474
    %vm1085 = vcmask 1042432
    %v1086 = vsel %vm1085, %v1083, %v589
    %v1087 = vsel %vm1085, %v1084, %v590
    %vm1088 = vcmask 1043456
    %v1089 = vsel %vm1088, %v1086, %v705
    %v1090 = vsel %vm1088, %v1087, %v706
    %vm1091 = vcmask 1044480
    %v1092 = vsel %vm1091, %v1089, %v821
    %v1093 = vsel %vm1091, %v1090, %v822
    %vm1094 = vcmask 1045504
    %v1095 = vsel %vm1094, %v1092, %v937
    %v1096 = vsel %vm1094, %v1093, %v938
    %vm1097 = vcmask 1046528
    %v1098 = vsel %vm1097, %v1095, %v1053
    %v1099 = vsel %vm1097, %v1096, %v1054
    %v1100 = vld [vmem:[#allocation2] sm:$0xff]
    %v1101 = vld [vmem:[#allocation2 + $0x8] sm:$0xff]
    %v1102 = vld [vmem:[#allocation2 + $0x10] sm:$0xff]
    %v1103 = vld [vmem:[#allocation2 + $0x18] sm:$0xff]
    %v1104 = vld [vmem:[#allocation5] sm:$0xff]
    %v1105 = vld [vmem:[#allocation5 + $0x8] sm:$0xff]
    %v1106 = vld [vmem:[#allocation5 + $0x10] sm:$0xff]
    %v1107 = vld [vmem:[#allocation5 + $0x18] sm:$0xff]
    %v1108 = vld [vmem:[%s6] sm:$0x1]
    %v1110 = vperm.slane %v1108, 0
    %1114 = vrot.lane.b32.xlu0 %v1098, 32
    %v1115 = vpop.permute.xlu0 %1114
    %1116 = vrot.lane.b32.xlu0 %v1099, 32
    %v1117 = vpop.permute.xlu0 %1116
    %v1118 = vsel %vm112, %v1115, 0
    %v1120 = vsel %vm112, %v1117, 0
    %1122 = vmatpush.msra.mxu0 0.0
    %1123 = vmatpush.msra.mxu0 0.0
    %1124 = vmatpush.msra.mxu0 0.0
    %1125 = vmatpush.msra.mxu0 0.0
    %1126 = vmatpush.msra.mxu0 0.0
    %1127 = vmatpush.msra.mxu0 0.0
    %1128 = vmatpush.msra.mxu0 0.0
    %1129 = vmatpush.msra.mxu0 0.0
    %1130 = vmatpush.msra.mxu0 0.0
    %1131 = vmatpush.msra.mxu0 0.0
    %1132 = vmatpush.msra.mxu0 0.0
    %1133 = vmatpush.msra.mxu0 0.0
    %1134 = vmatpush.msra.mxu0 %v1103
    %1135 = vmatpush.msra.mxu0 %v1102
    %1136 = vmatpush.msra.mxu0 %v1101
    %1137 = vmatpush.msra.mxu0 %v1100
    %1138 = vmatmul.f32.gmra.mxu0 %v1118
    %v1139 = vpop.f32.mrf.mxu0
    %v1140 = vadd.f32 %v1110, %v1139
    %1141 = vmatmul.f32.gmra.mxu0 %v1120
    %v1142 = vpop.f32.mrf.mxu0
    %v1143 = vadd.f32 %v1110, %v1142
    %1144 = vdwg.mxu0
    %1145 = vmatpush.msra.mxu0 0.0
    %1146 = vmatpush.msra.mxu0 0.0
    %1147 = vmatpush.msra.mxu0 0.0
    %1148 = vmatpush.msra.mxu0 0.0
    %1149 = vmatpush.msra.mxu0 0.0
    %1150 = vmatpush.msra.mxu0 0.0
    %1151 = vmatpush.msra.mxu0 0.0
    %1152 = vmatpush.msra.mxu0 0.0
    %1153 = vmatpush.msra.mxu0 0.0
    %1154 = vmatpush.msra.mxu0 0.0
    %1155 = vmatpush.msra.mxu0 0.0
    %1156 = vmatpush.msra.mxu0 0.0
    %1157 = vmatpush.msra.mxu0 %v1107
    %1158 = vmatpush.msra.mxu0 %v1106
    %1159 = vmatpush.msra.mxu0 %v1105
    %1160 = vmatpush.msra.mxu0 %v1104
    %1161 = vmatmul.f32.gmra.mxu0 %v143
    %v1162 = vpop.f32.mrf.mxu0
    %v1163 = vadd.f32 0.0, %v1162
    %1164 = vdwg.mxu0
    %v1166 = vrot.slane %v1163, 1
    %v1169 = vadd.f32 %v1140, %v1163
    %v1170 = vadd.f32 %v1143, %v1166
    %v1171 = vxor.u32 %v1169, 2147483648
    %v1172 = vxor.u32 %v1170, 2147483648
    %v1173 = vmul.f32 %v1171, 1.442695
    %v1174 = vpow.pop %v1173
    %v1175 = vmul.f32 %v1172, 1.442695
    %v1176 = vpow.pop %v1175
    %v1177 = vadd.f32 %v1174, 1.0
    %v1178 = vadd.f32 %v1176, 1.0
    %v1179 = vrcp.pop %v1177
    %v1180 = vmul.f32 %v1177, %v1179
    %v1181 = vsub.f32 1.0, %v1180
    %v1182 = vmul.f32 %v1179, %v1181
    %v1183 = vadd.f32 %v1179, %v1182
    %vm1184 = vweird.f32 %v1177
    %vm1185 = vweird.f32 %v1179
    %vm1186 = vmor %vm1184, %vm1185
    %v1187 = vsel %vm1186, %v1179, %v1183
    %v1188 = vand.u32 2147483647, %v1177
    %vm1189 = vcmp.eq.f32.partialorder %v1188, 8.507059e+37
    %v1190 = vand.u32 %v1177, 2147483648
    %v1191 = vor.u32 1.1754944e-38, %v1190
    %v1192 = vsel %vm1189, %v1191, %v1187
    %v1193 = vmul.f32 1.0, %v1192
    %v1194 = vrcp.pop %v1178
    %v1195 = vmul.f32 %v1178, %v1194
    %v1196 = vsub.f32 1.0, %v1195
    %v1197 = vmul.f32 %v1194, %v1196
    %v1198 = vadd.f32 %v1194, %v1197
    %vm1199 = vweird.f32 %v1178
    %vm1200 = vweird.f32 %v1194
    %vm1201 = vmor %vm1199, %vm1200
    %v1202 = vsel %vm1201, %v1194, %v1198
    %v1203 = vand.u32 2147483647, %v1178
    %vm1204 = vcmp.eq.f32.partialorder %v1203, 8.507059e+37
    %v1205 = vand.u32 %v1178, 2147483648
    %v1206 = vor.u32 1.1754944e-38, %v1205
    %v1207 = vsel %vm1204, %v1206, %v1202
    %v1208 = vmul.f32 1.0, %v1207
    %v1209 = vtanh.pop %v1169
    %v1210 = vtanh.pop %v1170
    %v1211 = vmul.f32 %v1193, 0.0
    %v1212 = vmul.f32 %v1208, 0.0
    %1215 = vrot.lane.b32.xlu0 %v1209, 64
    %v1216 = vpop.permute.xlu0 %1215
    %1217 = vrot.lane.b32.xlu0 %v1210, 64
    %v1218 = vpop.permute.xlu0 %1217
    %v1221 = vmul.f32 %v1193, %v1216
    %v1222 = vmul.f32 %v1208, %v1218
    %1225 = vrot.lane.b32.xlu0 %v1221, 32
    %v1226 = vpop.permute.xlu0 %1225
    %1227 = vrot.lane.b32.xlu0 %v1222, 32
    %v1228 = vpop.permute.xlu0 %1227
    %v1231 = vadd.f32 %v1211, %v1226
    %v1232 = vadd.f32 %v1212, %v1228
    %v1233 = vtanh.pop %v1231
    %v1234 = vtanh.pop %v1232
    %1237 = vrot.lane.b32.xlu0 %v1233, 64
    %v1238 = vpop.permute.xlu0 %1237
    %1239 = vrot.lane.b32.xlu0 %v1234, 64
    %v1240 = vpop.permute.xlu0 %1239
    %v1243 = vmul.f32 %v1193, %v1238
    %v1244 = vmul.f32 %v1208, %v1240
    %v1247 = vrot.slane %v1244, 7
    %v1248 = vsel %vm248, %v1247, %v1243
    %1249 = vrot.lane.b32.xlu0 %v1248, 32
    %v1250 = vpop.permute.xlu0 %1249
    %v1251 = vsel %vm112, %v1250, 0
    %1253 = vmatpush.msra.mxu0 0.0
    %1254 = vmatpush.msra.mxu0 0.0
    %1255 = vmatpush.msra.mxu0 0.0
    %1256 = vmatpush.msra.mxu0 0.0
    %1257 = vmatpush.msra.mxu0 0.0
    %1258 = vmatpush.msra.mxu0 0.0
    %1259 = vmatpush.msra.mxu0 0.0
    %1260 = vmatpush.msra.mxu0 0.0
    %1261 = vmatpush.msra.mxu0 0.0
    %1262 = vmatpush.msra.mxu0 0.0
    %1263 = vmatpush.msra.mxu0 0.0
    %1264 = vmatpush.msra.mxu0 0.0
    %1265 = vmatpush.msra.mxu0 %v1107
    %1266 = vmatpush.msra.mxu0 %v1106
    %1267 = vmatpush.msra.mxu0 %v1105
    %1268 = vmatpush.msra.mxu0 %v1104
    %1269 = vmatmul.f32.gmra.mxu0 %v1251
    %v1270 = vpop.f32.mrf.mxu0
    %v1271 = vadd.f32 0.0, %v1270
    %1272 = vdwg.mxu0
    %v1274 = vrot.slane %v1271, 7
    %v1277 = vadd.f32 %v1140, %v1274
    %v1278 = vadd.f32 %v1143, %v1271
    %v1279 = vxor.u32 %v1277, 2147483648
    %v1280 = vxor.u32 %v1278, 2147483648
    %v1281 = vmul.f32 %v1279, 1.442695
    %v1282 = vpow.pop %v1281
    %v1283 = vmul.f32 %v1280, 1.442695
    %v1284 = vpow.pop %v1283
    %v1285 = vadd.f32 %v1282, 1.0
    %v1286 = vadd.f32 %v1284, 1.0
    %v1287 = vrcp.pop %v1285
    %v1288 = vmul.f32 %v1285, %v1287
    %v1289 = vsub.f32 1.0, %v1288
    %v1290 = vmul.f32 %v1287, %v1289
    %v1291 = vadd.f32 %v1287, %v1290
    %vm1292 = vweird.f32 %v1285
    %vm1293 = vweird.f32 %v1287
    %vm1294 = vmor %vm1292, %vm1293
    %v1295 = vsel %vm1294, %v1287, %v1291
    %v1296 = vand.u32 2147483647, %v1285
    %vm1297 = vcmp.eq.f32.partialorder %v1296, 8.507059e+37
    %v1298 = vand.u32 %v1285, 2147483648
    %v1299 = vor.u32 1.1754944e-38, %v1298
    %v1300 = vsel %vm1297, %v1299, %v1295
    %v1301 = vmul.f32 1.0, %v1300
    %v1302 = vrcp.pop %v1286
    %v1303 = vmul.f32 %v1286, %v1302
    %v1304 = vsub.f32 1.0, %v1303
    %v1305 = vmul.f32 %v1302, %v1304
    %v1306 = vadd.f32 %v1302, %v1305
    %vm1307 = vweird.f32 %v1286
    %vm1308 = vweird.f32 %v1302
    %vm1309 = vmor %vm1307, %vm1308
    %v1310 = vsel %vm1309, %v1302, %v1306
    %v1311 = vand.u32 2147483647, %v1286
    %vm1312 = vcmp.eq.f32.partialorder %v1311, 8.507059e+37
    %v1313 = vand.u32 %v1286, 2147483648
    %v1314 = vor.u32 1.1754944e-38, %v1313
    %v1315 = vsel %vm1312, %v1314, %v1310
    %v1316 = vmul.f32 1.0, %v1315
    %v1317 = vtanh.pop %v1277
    %v1318 = vtanh.pop %v1278
    %v1321 = vrot.slane %v1231, 7
    %v1322 = vrot.slane %v1232, 7
    %v1325 = vmul.f32 %v1301, %v1321
    %v1326 = vmul.f32 %v1316, %v1322
    %1329 = vrot.lane.b32.xlu0 %v1317, 64
    %v1330 = vpop.permute.xlu0 %1329
    %1331 = vrot.lane.b32.xlu0 %v1318, 64
    %v1332 = vpop.permute.xlu0 %1331
    %v1335 = vmul.f32 %v1301, %v1330
    %v1336 = vmul.f32 %v1316, %v1332
    %1339 = vrot.lane.b32.xlu0 %v1335, 32
    %v1340 = vpop.permute.xlu0 %1339
    %1341 = vrot.lane.b32.xlu0 %v1336, 32
    %v1342 = vpop.permute.xlu0 %1341
    %v1345 = vadd.f32 %v1325, %v1340
    %v1346 = vadd.f32 %v1326, %v1342
    %v1347 = vtanh.pop %v1345
    %v1348 = vtanh.pop %v1346
    %1351 = vrot.lane.b32.xlu0 %v1347, 64
    %v1352 = vpop.permute.xlu0 %1351
    %1353 = vrot.lane.b32.xlu0 %v1348, 64
    %v1354 = vpop.permute.xlu0 %1353
    %v1357 = vmul.f32 %v1301, %v1352
    %v1358 = vmul.f32 %v1316, %v1354
    %v1361 = vrot.slane %v1357, 1
    %v1362 = vsel %vm248, %v1358, %v1361
    %1363 = vrot.lane.b32.xlu0 %v1362, 32
    %v1364 = vpop.permute.xlu0 %1363
    %v1365 = vsel %vm112, %v1364, 0
    %1367 = vmatpush.msra.mxu0 0.0
    %1368 = vmatpush.msra.mxu0 0.0
    %1369 = vmatpush.msra.mxu0 0.0
    %1370 = vmatpush.msra.mxu0 0.0
    %1371 = vmatpush.msra.mxu0 0.0
    %1372 = vmatpush.msra.mxu0 0.0
    %1373 = vmatpush.msra.mxu0 0.0
    %1374 = vmatpush.msra.mxu0 0.0
    %1375 = vmatpush.msra.mxu0 0.0
    %1376 = vmatpush.msra.mxu0 0.0
    %1377 = vmatpush.msra.mxu0 0.0
    %1378 = vmatpush.msra.mxu0 0.0
    %1379 = vmatpush.msra.mxu0 %v1107
    %1380 = vmatpush.msra.mxu0 %v1106
    %1381 = vmatpush.msra.mxu0 %v1105
    %1382 = vmatpush.msra.mxu0 %v1104
    %1383 = vmatmul.f32.gmra.mxu0 %v1365
    %v1384 = vpop.f32.mrf.mxu0
    %v1385 = vadd.f32 0.0, %v1384
    %1386 = vdwg.mxu0
    %v1388 = vrot.slane %v1385, 6
    %v1389 = vrot.slane %v1385, 7
    %v1392 = vadd.f32 %v1140, %v1388
    %v1393 = vadd.f32 %v1143, %v1389
    %v1394 = vxor.u32 %v1392, 2147483648
    %v1395 = vxor.u32 %v1393, 2147483648
    %v1396 = vmul.f32 %v1394, 1.442695
    %v1397 = vpow.pop %v1396
    %v1398 = vmul.f32 %v1395, 1.442695
    %v1399 = vpow.pop %v1398
    %v1400 = vadd.f32 %v1397, 1.0
    %v1401 = vadd.f32 %v1399, 1.0
    %v1402 = vrcp.pop %v1400
    %v1403 = vmul.f32 %v1400, %v1402
    %v1404 = vsub.f32 1.0, %v1403
    %v1405 = vmul.f32 %v1402, %v1404
    %v1406 = vadd.f32 %v1402, %v1405
    %vm1407 = vweird.f32 %v1400
    %vm1408 = vweird.f32 %v1402
    %vm1409 = vmor %vm1407, %vm1408
    %v1410 = vsel %vm1409, %v1402, %v1406
    %v1411 = vand.u32 2147483647, %v1400
    %vm1412 = vcmp.eq.f32.partialorder %v1411, 8.507059e+37
    %v1413 = vand.u32 %v1400, 2147483648
    %v1414 = vor.u32 1.1754944e-38, %v1413
    %v1415 = vsel %vm1412, %v1414, %v1410
    %v1416 = vmul.f32 1.0, %v1415
    %v1417 = vrcp.pop %v1401
    %v1418 = vmul.f32 %v1401, %v1417
    %v1419 = vsub.f32 1.0, %v1418
    %v1420 = vmul.f32 %v1417, %v1419
    %v1421 = vadd.f32 %v1417, %v1420
    %vm1422 = vweird.f32 %v1401
    %vm1423 = vweird.f32 %v1417
    %vm1424 = vmor %vm1422, %vm1423
    %v1425 = vsel %vm1424, %v1417, %v1421
    %v1426 = vand.u32 2147483647, %v1401
    %vm1427 = vcmp.eq.f32.partialorder %v1426, 8.507059e+37
    %v1428 = vand.u32 %v1401, 2147483648
    %v1429 = vor.u32 1.1754944e-38, %v1428
    %v1430 = vsel %vm1427, %v1429, %v1425
    %v1431 = vmul.f32 1.0, %v1430
    %v1432 = vtanh.pop %v1392
    %v1433 = vtanh.pop %v1393
    %v1436 = vrot.slane %v1345, 7
    %v1437 = vrot.slane %v1346, 7
    %v1440 = vmul.f32 %v1416, %v1436
    %v1441 = vmul.f32 %v1431, %v1437
    %1444 = vrot.lane.b32.xlu0 %v1432, 64
    %v1445 = vpop.permute.xlu0 %1444
    %1446 = vrot.lane.b32.xlu0 %v1433, 64
    %v1447 = vpop.permute.xlu0 %1446
    %v1450 = vmul.f32 %v1416, %v1445
    %v1451 = vmul.f32 %v1431, %v1447
    %1454 = vrot.lane.b32.xlu0 %v1450, 32
    %v1455 = vpop.permute.xlu0 %1454
    %1456 = vrot.lane.b32.xlu0 %v1451, 32
    %v1457 = vpop.permute.xlu0 %1456
    %v1460 = vadd.f32 %v1440, %v1455
    %v1461 = vadd.f32 %v1441, %v1457
    %v1462 = vtanh.pop %v1460
    %v1463 = vtanh.pop %v1461
    %1466 = vrot.lane.b32.xlu0 %v1462, 64
    %v1467 = vpop.permute.xlu0 %1466
    %1468 = vrot.lane.b32.xlu0 %v1463, 64
    %v1469 = vpop.permute.xlu0 %1468
    %v1472 = vmul.f32 %v1416, %v1467
    %v1473 = vmul.f32 %v1431, %v1469
    %v1476 = vrot.slane %v1472, 2
    %v1477 = vrot.slane %v1473, 1
    %v1478 = vsel %vm248, %v1477, %v1476
    %1479 = vrot.lane.b32.xlu0 %v1478, 32
    %v1480 = vpop.permute.xlu0 %1479
    %v1481 = vsel %vm112, %v1480, 0
    %1483 = vmatpush.msra.mxu0 0.0
    %1484 = vmatpush.msra.mxu0 0.0
    %1485 = vmatpush.msra.mxu0 0.0
    %1486 = vmatpush.msra.mxu0 0.0
    %1487 = vmatpush.msra.mxu0 0.0
    %1488 = vmatpush.msra.mxu0 0.0
    %1489 = vmatpush.msra.mxu0 0.0
    %1490 = vmatpush.msra.mxu0 0.0
    %1491 = vmatpush.msra.mxu0 0.0
    %1492 = vmatpush.msra.mxu0 0.0
    %1493 = vmatpush.msra.mxu0 0.0
    %1494 = vmatpush.msra.mxu0 0.0
    %1495 = vmatpush.msra.mxu0 %v1107
    %1496 = vmatpush.msra.mxu0 %v1106
    %1497 = vmatpush.msra.mxu0 %v1105
    %1498 = vmatpush.msra.mxu0 %v1104
    %1499 = vmatmul.f32.gmra.mxu0 %v1481
    %v1500 = vpop.f32.mrf.mxu0
    %v1501 = vadd.f32 0.0, %v1500
    %1502 = vdwg.mxu0
    %v1504 = vrot.slane %v1501, 5
    %v1505 = vrot.slane %v1501, 6
    %v1508 = vadd.f32 %v1140, %v1504
    %v1509 = vadd.f32 %v1143, %v1505
    %v1510 = vxor.u32 %v1508, 2147483648
    %v1511 = vxor.u32 %v1509, 2147483648
    %v1512 = vmul.f32 %v1510, 1.442695
    %v1513 = vpow.pop %v1512
    %v1514 = vmul.f32 %v1511, 1.442695
    %v1515 = vpow.pop %v1514
    %v1516 = vadd.f32 %v1513, 1.0
    %v1517 = vadd.f32 %v1515, 1.0
    %v1518 = vrcp.pop %v1516
    %v1519 = vmul.f32 %v1516, %v1518
    %v1520 = vsub.f32 1.0, %v1519
    %v1521 = vmul.f32 %v1518, %v1520
    %v1522 = vadd.f32 %v1518, %v1521
    %vm1523 = vweird.f32 %v1516
    %vm1524 = vweird.f32 %v1518
    %vm1525 = vmor %vm1523, %vm1524
    %v1526 = vsel %vm1525, %v1518, %v1522
    %v1527 = vand.u32 2147483647, %v1516
    %vm1528 = vcmp.eq.f32.partialorder %v1527, 8.507059e+37
    %v1529 = vand.u32 %v1516, 2147483648
    %v1530 = vor.u32 1.1754944e-38, %v1529
    %v1531 = vsel %vm1528, %v1530, %v1526
    %v1532 = vmul.f32 1.0, %v1531
    %v1533 = vrcp.pop %v1517
    %v1534 = vmul.f32 %v1517, %v1533
    %v1535 = vsub.f32 1.0, %v1534
    %v1536 = vmul.f32 %v1533, %v1535
    %v1537 = vadd.f32 %v1533, %v1536
    %vm1538 = vweird.f32 %v1517
    %vm1539 = vweird.f32 %v1533
    %vm1540 = vmor %vm1538, %vm1539
    %v1541 = vsel %vm1540, %v1533, %v1537
    %v1542 = vand.u32 2147483647, %v1517
    %vm1543 = vcmp.eq.f32.partialorder %v1542, 8.507059e+37
    %v1544 = vand.u32 %v1517, 2147483648
    %v1545 = vor.u32 1.1754944e-38, %v1544
    %v1546 = vsel %vm1543, %v1545, %v1541
    %v1547 = vmul.f32 1.0, %v1546
    %v1548 = vtanh.pop %v1508
    %v1549 = vtanh.pop %v1509
    %v1552 = vrot.slane %v1460, 7
    %v1553 = vrot.slane %v1461, 7
    %v1556 = vmul.f32 %v1532, %v1552
    %v1557 = vmul.f32 %v1547, %v1553
    %1560 = vrot.lane.b32.xlu0 %v1548, 64
    %v1561 = vpop.permute.xlu0 %1560
    %1562 = vrot.lane.b32.xlu0 %v1549, 64
    %v1563 = vpop.permute.xlu0 %1562
    %v1566 = vmul.f32 %v1532, %v1561
    %v1567 = vmul.f32 %v1547, %v1563
    %1570 = vrot.lane.b32.xlu0 %v1566, 32
    %v1571 = vpop.permute.xlu0 %1570
    %1572 = vrot.lane.b32.xlu0 %v1567, 32
    %v1573 = vpop.permute.xlu0 %1572
    %v1576 = vadd.f32 %v1556, %v1571
    %v1577 = vadd.f32 %v1557, %v1573
    %v1578 = vtanh.pop %v1576
    %v1579 = vtanh.pop %v1577
    %1582 = vrot.lane.b32.xlu0 %v1578, 64
    %v1583 = vpop.permute.xlu0 %1582
    %1584 = vrot.lane.b32.xlu0 %v1579, 64
    %v1585 = vpop.permute.xlu0 %1584
    %v1588 = vmul.f32 %v1532, %v1583
    %v1589 = vmul.f32 %v1547, %v1585
    %v1592 = vrot.slane %v1588, 3
    %v1593 = vrot.slane %v1589, 2
    %v1594 = vsel %vm248, %v1593, %v1592
    %1595 = vrot.lane.b32.xlu0 %v1594, 32
    %v1596 = vpop.permute.xlu0 %1595
    %v1597 = vsel %vm112, %v1596, 0
    %1599 = vmatpush.msra.mxu0 0.0
    %1600 = vmatpush.msra.mxu0 0.0
    %1601 = vmatpush.msra.mxu0 0.0
    %1602 = vmatpush.msra.mxu0 0.0
    %1603 = vmatpush.msra.mxu0 0.0
    %1604 = vmatpush.msra.mxu0 0.0
    %1605 = vmatpush.msra.mxu0 0.0
    %1606 = vmatpush.msra.mxu0 0.0
    %1607 = vmatpush.msra.mxu0 0.0
    %1608 = vmatpush.msra.mxu0 0.0
    %1609 = vmatpush.msra.mxu0 0.0
    %1610 = vmatpush.msra.mxu0 0.0
    %1611 = vmatpush.msra.mxu0 %v1107
    %1612 = vmatpush.msra.mxu0 %v1106
    %1613 = vmatpush.msra.mxu0 %v1105
    %1614 = vmatpush.msra.mxu0 %v1104
    %1615 = vmatmul.f32.gmra.mxu0 %v1597
    %v1616 = vpop.f32.mrf.mxu0
    %v1617 = vadd.f32 0.0, %v1616
    %1618 = vdwg.mxu0
    %v1620 = vrot.slane %v1617, 4
    %v1621 = vrot.slane %v1617, 5
    %v1624 = vadd.f32 %v1140, %v1620
    %v1625 = vadd.f32 %v1143, %v1621
    %v1626 = vxor.u32 %v1624, 2147483648
    %v1627 = vxor.u32 %v1625, 2147483648
    %v1628 = vmul.f32 %v1626, 1.442695
    %v1629 = vpow.pop %v1628
    %v1630 = vmul.f32 %v1627, 1.442695
    %v1631 = vpow.pop %v1630
    %v1632 = vadd.f32 %v1629, 1.0
    %v1633 = vadd.f32 %v1631, 1.0
    %v1634 = vrcp.pop %v1632
    %v1635 = vmul.f32 %v1632, %v1634
    %v1636 = vsub.f32 1.0, %v1635
    %v1637 = vmul.f32 %v1634, %v1636
    %v1638 = vadd.f32 %v1634, %v1637
    %vm1639 = vweird.f32 %v1632
    %vm1640 = vweird.f32 %v1634
    %vm1641 = vmor %vm1639, %vm1640
    %v1642 = vsel %vm1641, %v1634, %v1638
    %v1643 = vand.u32 2147483647, %v1632
    %vm1644 = vcmp.eq.f32.partialorder %v1643, 8.507059e+37
    %v1645 = vand.u32 %v1632, 2147483648
    %v1646 = vor.u32 1.1754944e-38, %v1645
    %v1647 = vsel %vm1644, %v1646, %v1642
    %v1648 = vmul.f32 1.0, %v1647
    %v1649 = vrcp.pop %v1633
    %v1650 = vmul.f32 %v1633, %v1649
    %v1651 = vsub.f32 1.0, %v1650
    %v1652 = vmul.f32 %v1649, %v1651
    %v1653 = vadd.f32 %v1649, %v1652
    %vm1654 = vweird.f32 %v1633
    %vm1655 = vweird.f32 %v1649
    %vm1656 = vmor %vm1654, %vm1655
    %v1657 = vsel %vm1656, %v1649, %v1653
    %v1658 = vand.u32 2147483647, %v1633
    %vm1659 = vcmp.eq.f32.partialorder %v1658, 8.507059e+37
    %v1660 = vand.u32 %v1633, 2147483648
    %v1661 = vor.u32 1.1754944e-38, %v1660
    %v1662 = vsel %vm1659, %v1661, %v1657
    %v1663 = vmul.f32 1.0, %v1662
    %v1664 = vtanh.pop %v1624
    %v1665 = vtanh.pop %v1625
    %v1668 = vrot.slane %v1576, 7
    %v1669 = vrot.slane %v1577, 7
    %v1672 = vmul.f32 %v1648, %v1668
    %v1673 = vmul.f32 %v1663, %v1669
    %1676 = vrot.lane.b32.xlu0 %v1664, 64
    %v1677 = vpop.permute.xlu0 %1676
    %1678 = vrot.lane.b32.xlu0 %v1665, 64
    %v1679 = vpop.permute.xlu0 %1678
    %v1682 = vmul.f32 %v1648, %v1677
    %v1683 = vmul.f32 %v1663, %v1679
    %1686 = vrot.lane.b32.xlu0 %v1682, 32
    %v1687 = vpop.permute.xlu0 %1686
    %1688 = vrot.lane.b32.xlu0 %v1683, 32
    %v1689 = vpop.permute.xlu0 %1688
    %v1692 = vadd.f32 %v1672, %v1687
    %v1693 = vadd.f32 %v1673, %v1689
    %v1694 = vtanh.pop %v1692
    %v1695 = vtanh.pop %v1693
    %1698 = vrot.lane.b32.xlu0 %v1694, 64
    %v1699 = vpop.permute.xlu0 %1698
    %1700 = vrot.lane.b32.xlu0 %v1695, 64
    %v1701 = vpop.permute.xlu0 %1700
    %v1704 = vmul.f32 %v1648, %v1699
    %v1705 = vmul.f32 %v1663, %v1701
    %v1708 = vrot.slane %v1704, 4
    %v1709 = vrot.slane %v1705, 3
    %v1710 = vsel %vm248, %v1709, %v1708
    %1711 = vrot.lane.b32.xlu0 %v1710, 32
    %v1712 = vpop.permute.xlu0 %1711
    %v1713 = vsel %vm112, %v1712, 0
    %1715 = vmatpush.msra.mxu0 0.0
    %1716 = vmatpush.msra.mxu0 0.0
    %1717 = vmatpush.msra.mxu0 0.0
    %1718 = vmatpush.msra.mxu0 0.0
    %1719 = vmatpush.msra.mxu0 0.0
    %1720 = vmatpush.msra.mxu0 0.0
    %1721 = vmatpush.msra.mxu0 0.0
    %1722 = vmatpush.msra.mxu0 0.0
    %1723 = vmatpush.msra.mxu0 0.0
    %1724 = vmatpush.msra.mxu0 0.0
    %1725 = vmatpush.msra.mxu0 0.0
    %1726 = vmatpush.msra.mxu0 0.0
    %1727 = vmatpush.msra.mxu0 %v1107
    %1728 = vmatpush.msra.mxu0 %v1106
    %1729 = vmatpush.msra.mxu0 %v1105
    %1730 = vmatpush.msra.mxu0 %v1104
    %1731 = vmatmul.f32.gmra.mxu0 %v1713
    %v1732 = vpop.f32.mrf.mxu0
    %v1733 = vadd.f32 0.0, %v1732
    %1734 = vdwg.mxu0
    %v1736 = vrot.slane %v1733, 3
    %v1737 = vrot.slane %v1733, 4
    %v1740 = vadd.f32 %v1140, %v1736
    %v1741 = vadd.f32 %v1143, %v1737
    %v1742 = vxor.u32 %v1740, 2147483648
    %v1743 = vxor.u32 %v1741, 2147483648
    %v1744 = vmul.f32 %v1742, 1.442695
    %v1745 = vpow.pop %v1744
    %v1746 = vmul.f32 %v1743, 1.442695
    %v1747 = vpow.pop %v1746
    %v1748 = vadd.f32 %v1745, 1.0
    %v1749 = vadd.f32 %v1747, 1.0
    %v1750 = vrcp.pop %v1748
    %v1751 = vmul.f32 %v1748, %v1750
    %v1752 = vsub.f32 1.0, %v1751
    %v1753 = vmul.f32 %v1750, %v1752
    %v1754 = vadd.f32 %v1750, %v1753
    %vm1755 = vweird.f32 %v1748
    %vm1756 = vweird.f32 %v1750
    %vm1757 = vmor %vm1755, %vm1756
    %v1758 = vsel %vm1757, %v1750, %v1754
    %v1759 = vand.u32 2147483647, %v1748
    %vm1760 = vcmp.eq.f32.partialorder %v1759, 8.507059e+37
    %v1761 = vand.u32 %v1748, 2147483648
    %v1762 = vor.u32 1.1754944e-38, %v1761
    %v1763 = vsel %vm1760, %v1762, %v1758
    %v1764 = vmul.f32 1.0, %v1763
    %v1765 = vrcp.pop %v1749
    %v1766 = vmul.f32 %v1749, %v1765
    %v1767 = vsub.f32 1.0, %v1766
    %v1768 = vmul.f32 %v1765, %v1767
    %v1769 = vadd.f32 %v1765, %v1768
    %vm1770 = vweird.f32 %v1749
    %vm1771 = vweird.f32 %v1765
    %vm1772 = vmor %vm1770, %vm1771
    %v1773 = vsel %vm1772, %v1765, %v1769
    %v1774 = vand.u32 2147483647, %v1749
    %vm1775 = vcmp.eq.f32.partialorder %v1774, 8.507059e+37
    %v1776 = vand.u32 %v1749, 2147483648
    %v1777 = vor.u32 1.1754944e-38, %v1776
    %v1778 = vsel %vm1775, %v1777, %v1773
    %v1779 = vmul.f32 1.0, %v1778
    %v1780 = vtanh.pop %v1740
    %v1781 = vtanh.pop %v1741
    %v1784 = vrot.slane %v1692, 7
    %v1785 = vrot.slane %v1693, 7
    %v1788 = vmul.f32 %v1764, %v1784
    %v1789 = vmul.f32 %v1779, %v1785
    %1792 = vrot.lane.b32.xlu0 %v1780, 64
    %v1793 = vpop.permute.xlu0 %1792
    %1794 = vrot.lane.b32.xlu0 %v1781, 64
    %v1795 = vpop.permute.xlu0 %1794
    %v1798 = vmul.f32 %v1764, %v1793
    %v1799 = vmul.f32 %v1779, %v1795
    %1802 = vrot.lane.b32.xlu0 %v1798, 32
    %v1803 = vpop.permute.xlu0 %1802
    %1804 = vrot.lane.b32.xlu0 %v1799, 32
    %v1805 = vpop.permute.xlu0 %1804
    %v1808 = vadd.f32 %v1788, %v1803
    %v1809 = vadd.f32 %v1789, %v1805
    %v1810 = vtanh.pop %v1808
    %v1811 = vtanh.pop %v1809
    %1814 = vrot.lane.b32.xlu0 %v1810, 64
    %v1815 = vpop.permute.xlu0 %1814
    %1816 = vrot.lane.b32.xlu0 %v1811, 64
    %v1817 = vpop.permute.xlu0 %1816
    %v1820 = vmul.f32 %v1764, %v1815
    %v1821 = vmul.f32 %v1779, %v1817
    %v1824 = vrot.slane %v1820, 5
    %v1825 = vrot.slane %v1821, 4
    %v1826 = vsel %vm248, %v1825, %v1824
    %1827 = vrot.lane.b32.xlu0 %v1826, 32
    %v1828 = vpop.permute.xlu0 %1827
    %v1829 = vsel %vm112, %v1828, 0
    %1831 = vmatpush.msra.mxu0 0.0
    %1832 = vmatpush.msra.mxu0 0.0
    %1833 = vmatpush.msra.mxu0 0.0
    %1834 = vmatpush.msra.mxu0 0.0
    %1835 = vmatpush.msra.mxu0 0.0
    %1836 = vmatpush.msra.mxu0 0.0
    %1837 = vmatpush.msra.mxu0 0.0
    %1838 = vmatpush.msra.mxu0 0.0
    %1839 = vmatpush.msra.mxu0 0.0
    %1840 = vmatpush.msra.mxu0 0.0
    %1841 = vmatpush.msra.mxu0 0.0
    %1842 = vmatpush.msra.mxu0 0.0
    %1843 = vmatpush.msra.mxu0 %v1107
    %1844 = vmatpush.msra.mxu0 %v1106
    %1845 = vmatpush.msra.mxu0 %v1105
    %1846 = vmatpush.msra.mxu0 %v1104
    %1847 = vmatmul.f32.gmra.mxu0 %v1829
    %v1848 = vpop.f32.mrf.mxu0
    %v1849 = vadd.f32 0.0, %v1848
    %1850 = vdwg.mxu0
    %v1852 = vrot.slane %v1849, 2
    %v1853 = vrot.slane %v1849, 3
    %v1856 = vadd.f32 %v1140, %v1852
    %v1857 = vadd.f32 %v1143, %v1853
    %v1858 = vxor.u32 %v1856, 2147483648
    %v1859 = vxor.u32 %v1857, 2147483648
    %v1860 = vmul.f32 %v1858, 1.442695
    %v1861 = vpow.pop %v1860
    %v1862 = vmul.f32 %v1859, 1.442695
    %v1863 = vpow.pop %v1862
    %v1864 = vadd.f32 %v1861, 1.0
    %v1865 = vadd.f32 %v1863, 1.0
    %v1866 = vrcp.pop %v1864
    %v1867 = vmul.f32 %v1864, %v1866
    %v1868 = vsub.f32 1.0, %v1867
    %v1869 = vmul.f32 %v1866, %v1868
    %v1870 = vadd.f32 %v1866, %v1869
    %vm1871 = vweird.f32 %v1864
    %vm1872 = vweird.f32 %v1866
    %vm1873 = vmor %vm1871, %vm1872
    %v1874 = vsel %vm1873, %v1866, %v1870
    %v1875 = vand.u32 2147483647, %v1864
    %vm1876 = vcmp.eq.f32.partialorder %v1875, 8.507059e+37
    %v1877 = vand.u32 %v1864, 2147483648
    %v1878 = vor.u32 1.1754944e-38, %v1877
    %v1879 = vsel %vm1876, %v1878, %v1874
    %v1880 = vmul.f32 1.0, %v1879
    %v1881 = vrcp.pop %v1865
    %v1882 = vmul.f32 %v1865, %v1881
    %v1883 = vsub.f32 1.0, %v1882
    %v1884 = vmul.f32 %v1881, %v1883
    %v1885 = vadd.f32 %v1881, %v1884
    %vm1886 = vweird.f32 %v1865
    %vm1887 = vweird.f32 %v1881
    %vm1888 = vmor %vm1886, %vm1887
    %v1889 = vsel %vm1888, %v1881, %v1885
    %v1890 = vand.u32 2147483647, %v1865
    %vm1891 = vcmp.eq.f32.partialorder %v1890, 8.507059e+37
    %v1892 = vand.u32 %v1865, 2147483648
    %v1893 = vor.u32 1.1754944e-38, %v1892
    %v1894 = vsel %vm1891, %v1893, %v1889
    %v1895 = vmul.f32 1.0, %v1894
    %v1896 = vtanh.pop %v1856
    %v1897 = vtanh.pop %v1857
    %v1900 = vrot.slane %v1808, 7
    %v1901 = vrot.slane %v1809, 7
    %v1904 = vmul.f32 %v1880, %v1900
    %v1905 = vmul.f32 %v1895, %v1901
    %1908 = vrot.lane.b32.xlu0 %v1896, 64
    %v1909 = vpop.permute.xlu0 %1908
    %1910 = vrot.lane.b32.xlu0 %v1897, 64
    %v1911 = vpop.permute.xlu0 %1910
    %v1914 = vmul.f32 %v1880, %v1909
    %v1915 = vmul.f32 %v1895, %v1911
    %1918 = vrot.lane.b32.xlu0 %v1914, 32
    %v1919 = vpop.permute.xlu0 %1918
    %1920 = vrot.lane.b32.xlu0 %v1915, 32
    %v1921 = vpop.permute.xlu0 %1920
    %v1924 = vadd.f32 %v1904, %v1919
    %v1925 = vadd.f32 %v1905, %v1921
    %v1926 = vtanh.pop %v1924
    %v1927 = vtanh.pop %v1925
    %1930 = vrot.lane.b32.xlu0 %v1926, 64
    %v1931 = vpop.permute.xlu0 %1930
    %1932 = vrot.lane.b32.xlu0 %v1927, 64
    %v1933 = vpop.permute.xlu0 %1932
    %v1936 = vmul.f32 %v1880, %v1931
    %v1937 = vmul.f32 %v1895, %v1933
    %v1940 = vrot.slane %v1936, 6
    %v1941 = vrot.slane %v1937, 5
    %v1942 = vsel %vm248, %v1941, %v1940
    %1943 = vrot.lane.b32.xlu0 %v1942, 32
    %v1944 = vpop.permute.xlu0 %1943
    %v1945 = vsel %vm112, %v1944, 0
    %1947 = vmatpush.msra.mxu0 0.0
    %1948 = vmatpush.msra.mxu0 0.0
    %1949 = vmatpush.msra.mxu0 0.0
    %1950 = vmatpush.msra.mxu0 0.0
    %1951 = vmatpush.msra.mxu0 0.0
    %1952 = vmatpush.msra.mxu0 0.0
    %1953 = vmatpush.msra.mxu0 0.0
    %1954 = vmatpush.msra.mxu0 0.0
    %1955 = vmatpush.msra.mxu0 0.0
    %1956 = vmatpush.msra.mxu0 0.0
    %1957 = vmatpush.msra.mxu0 0.0
    %1958 = vmatpush.msra.mxu0 0.0
    %1959 = vmatpush.msra.mxu0 %v1107
    %1960 = vmatpush.msra.mxu0 %v1106
    %1961 = vmatpush.msra.mxu0 %v1105
    %1962 = vmatpush.msra.mxu0 %v1104
    %1963 = vmatmul.f32.gmra.mxu0 %v1945
    %v1964 = vpop.f32.mrf.mxu0
    %v1965 = vadd.f32 0.0, %v1964
    %1966 = vdwg.mxu0
    %v1968 = vrot.slane %v1965, 1
    %v1969 = vrot.slane %v1965, 2
    %v1972 = vadd.f32 %v1140, %v1968
    %v1973 = vadd.f32 %v1143, %v1969
    %v1974 = vxor.u32 %v1972, 2147483648
    %v1975 = vxor.u32 %v1973, 2147483648
    %v1976 = vmul.f32 %v1974, 1.442695
    %v1977 = vpow.pop %v1976
    %v1978 = vmul.f32 %v1975, 1.442695
    %v1979 = vpow.pop %v1978
    %v1980 = vadd.f32 %v1977, 1.0
    %v1981 = vadd.f32 %v1979, 1.0
    %v1982 = vrcp.pop %v1980
    %v1983 = vmul.f32 %v1980, %v1982
    %v1984 = vsub.f32 1.0, %v1983
    %v1985 = vmul.f32 %v1982, %v1984
    %v1986 = vadd.f32 %v1982, %v1985
    %vm1987 = vweird.f32 %v1980
    %vm1988 = vweird.f32 %v1982
    %vm1989 = vmor %vm1987, %vm1988
    %v1990 = vsel %vm1989, %v1982, %v1986
    %v1991 = vand.u32 2147483647, %v1980
    %vm1992 = vcmp.eq.f32.partialorder %v1991, 8.507059e+37
    %v1993 = vand.u32 %v1980, 2147483648
    %v1994 = vor.u32 1.1754944e-38, %v1993
    %v1995 = vsel %vm1992, %v1994, %v1990
    %v1996 = vmul.f32 1.0, %v1995
    %v1997 = vrcp.pop %v1981
    %v1998 = vmul.f32 %v1981, %v1997
    %v1999 = vsub.f32 1.0, %v1998
    %v2000 = vmul.f32 %v1997, %v1999
    %v2001 = vadd.f32 %v1997, %v2000
    %vm2002 = vweird.f32 %v1981
    %vm2003 = vweird.f32 %v1997
    %vm2004 = vmor %vm2002, %vm2003
    %v2005 = vsel %vm2004, %v1997, %v2001
    %v2006 = vand.u32 2147483647, %v1981
    %vm2007 = vcmp.eq.f32.partialorder %v2006, 8.507059e+37
    %v2008 = vand.u32 %v1981, 2147483648
    %v2009 = vor.u32 1.1754944e-38, %v2008
    %v2010 = vsel %vm2007, %v2009, %v2005
    %v2011 = vmul.f32 1.0, %v2010
    %v2012 = vtanh.pop %v1972
    %v2013 = vtanh.pop %v1973
    %v2016 = vrot.slane %v1924, 7
    %v2017 = vrot.slane %v1925, 7
    %v2020 = vmul.f32 %v1996, %v2016
    %v2021 = vmul.f32 %v2011, %v2017
    %2024 = vrot.lane.b32.xlu0 %v2012, 64
    %v2025 = vpop.permute.xlu0 %2024
    %2026 = vrot.lane.b32.xlu0 %v2013, 64
    %v2027 = vpop.permute.xlu0 %2026
    %v2030 = vmul.f32 %v1996, %v2025
    %v2031 = vmul.f32 %v2011, %v2027
    %2034 = vrot.lane.b32.xlu0 %v2030, 32
    %v2035 = vpop.permute.xlu0 %2034
    %2036 = vrot.lane.b32.xlu0 %v2031, 32
    %v2037 = vpop.permute.xlu0 %2036
    %v2040 = vadd.f32 %v2020, %v2035
    %v2041 = vadd.f32 %v2021, %v2037
    %v2042 = vtanh.pop %v2040
    %v2043 = vtanh.pop %v2041
    %2046 = vrot.lane.b32.xlu0 %v2042, 64
    %v2047 = vpop.permute.xlu0 %2046
    %2048 = vrot.lane.b32.xlu0 %v2043, 64
    %v2049 = vpop.permute.xlu0 %2048
    %v2052 = vmul.f32 %v1996, %v2047
    %v2053 = vmul.f32 %v2011, %v2049
    %v2056 = vrot.slane %v2053, 7
    %2057 = vrot.lane.b32.xlu0 %v2052, 32
    %v2058 = vpop.permute.xlu0 %2057
    %2059 = vrot.lane.b32.xlu0 %v2056, 32
    %v2060 = vpop.permute.xlu0 %2059
    %s2063 = scalar_lea.vmem [#allocation11], 2
    %2064 = vst.msk [vmem:[%s2063 - $0x7] sm:$0x80] %vm1064, %v2058
    %2065 = vst.msk [vmem:[%s2063 + $0x1] sm:$0x1] %vm1066, %v2060
    %v2068 = vrot.slane %v2041, 7
    %2069 = vrot.lane.b32.xlu0 %v2040, 96
    %v2070 = vpop.permute.xlu0 %2069
    %2071 = vrot.lane.b32.xlu0 %v2068, 96
    %v2072 = vpop.permute.xlu0 %2071
    %s2075 = scalar_lea.vmem [#allocation13], 2
    %2076 = vst.msk [vmem:[%s2075 - $0x7] sm:$0x80] %vm1064, %v2070
    %2077 = vst.msk [vmem:[%s2075 + $0x1] sm:$0x1] %vm1066, %v2072
    %v2078 = vsel %vm1079, %v1243, %v1357
    %v2079 = vsel %vm1079, %v1244, %v1358
    %v2080 = vsel %vm1082, %v2078, %v1472
    %v2081 = vsel %vm1082, %v2079, %v1473
    %v2082 = vsel %vm1085, %v2080, %v1588
    %v2083 = vsel %vm1085, %v2081, %v1589
    %v2084 = vsel %vm1088, %v2082, %v1704
    %v2085 = vsel %vm1088, %v2083, %v1705
    %v2086 = vsel %vm1091, %v2084, %v1820
    %v2087 = vsel %vm1091, %v2085, %v1821
    %v2088 = vsel %vm1094, %v2086, %v1936
    %v2089 = vsel %vm1094, %v2087, %v1937
    %v2090 = vsel %vm1097, %v2088, %v2052
    %v2091 = vsel %vm1097, %v2089, %v2053
    %v2092 = vld [vmem:[#allocation7] sm:$0xff]
    %v2093 = vld [vmem:[#allocation7 + $0x8] sm:$0xff]
    %v2094 = vld [vmem:[#allocation7 + $0x10] sm:$0xff]
    %v2095 = vld [vmem:[#allocation7 + $0x18] sm:$0xff]
    %v2096 = vld [vmem:[#allocation8] sm:$0x1]
    %v2098 = vperm.slane %v2096, 0
    %2102 = vrot.lane.b32.xlu0 %v2090, 32
    %v2103 = vpop.permute.xlu0 %2102
    %2104 = vrot.lane.b32.xlu0 %v2091, 32
    %v2105 = vpop.permute.xlu0 %2104
    %v2106 = vsel %vm112, %v2103, 0
    %v2108 = vsel %vm112, %v2105, 0
    %2110 = vmatpush.msra.mxu0 0.0
    %2111 = vmatpush.msra.mxu0 0.0
    %2112 = vmatpush.msra.mxu0 0.0
    %2113 = vmatpush.msra.mxu0 0.0
    %2114 = vmatpush.msra.mxu0 0.0
    %2115 = vmatpush.msra.mxu0 0.0
    %2116 = vmatpush.msra.mxu0 0.0
    %2117 = vmatpush.msra.mxu0 0.0
    %2118 = vmatpush.msra.mxu0 0.0
    %2119 = vmatpush.msra.mxu0 0.0
    %2120 = vmatpush.msra.mxu0 0.0
    %2121 = vmatpush.msra.mxu0 0.0
    %2122 = vmatpush.msra.mxu0 %v2095
    %2123 = vmatpush.msra.mxu0 %v2094
    %2124 = vmatpush.msra.mxu0 %v2093
    %2125 = vmatpush.msra.mxu0 %v2092
    %2126 = vmatmul.f32.gmra.mxu0 %v2106
    %v2127 = vpop.f32.mrf.mxu0
    %v2128 = vadd.f32 %v2098, %v2127
    %2129 = vmatmul.f32.gmra.mxu0 %v2108
    %v2130 = vpop.f32.mrf.mxu0
    %v2131 = vadd.f32 %v2098, %v2130
    %2132 = vdwg.mxu0
    %v2133 = vxor.u32 %v2128, 2147483648
    %v2134 = vxor.u32 %v2131, 2147483648
    %v2135 = vmul.f32 %v2133, 1.442695
    %v2136 = vpow.pop %v2135
    %v2137 = vmul.f32 %v2134, 1.442695
    %v2138 = vpow.pop %v2137
    %v2139 = vadd.f32 %v2136, 1.0
    %v2140 = vadd.f32 %v2138, 1.0
    %v2141 = vrcp.pop %v2139
    %v2142 = vmul.f32 %v2139, %v2141
    %v2143 = vsub.f32 1.0, %v2142
    %v2144 = vmul.f32 %v2141, %v2143
    %v2145 = vadd.f32 %v2141, %v2144
    %vm2146 = vweird.f32 %v2139
    %vm2147 = vweird.f32 %v2141
    %vm2148 = vmor %vm2146, %vm2147
    %v2149 = vsel %vm2148, %v2141, %v2145
    %v2150 = vand.u32 2147483647, %v2139
    %vm2151 = vcmp.eq.f32.partialorder %v2150, 8.507059e+37
    %v2152 = vand.u32 %v2139, 2147483648
    %v2153 = vor.u32 1.1754944e-38, %v2152
    %v2154 = vsel %vm2151, %v2153, %v2149
    %v2155 = vmul.f32 1.0, %v2154
    %v2156 = vrcp.pop %v2140
    %v2157 = vmul.f32 %v2140, %v2156
    %v2158 = vsub.f32 1.0, %v2157
    %v2159 = vmul.f32 %v2156, %v2158
    %v2160 = vadd.f32 %v2156, %v2159
    %vm2161 = vweird.f32 %v2140
    %vm2162 = vweird.f32 %v2156
    %vm2163 = vmor %vm2161, %vm2162
    %v2164 = vsel %vm2163, %v2156, %v2160
    %v2165 = vand.u32 2147483647, %v2140
    %vm2166 = vcmp.eq.f32.partialorder %v2165, 8.507059e+37
    %v2167 = vand.u32 %v2140, 2147483648
    %v2168 = vor.u32 1.1754944e-38, %v2167
    %v2169 = vsel %vm2166, %v2168, %v2164
    %v2170 = vmul.f32 1.0, %v2169
    %2171 = vst [vmem:[#allocation10] sm:$0xff] %v2155
    %2172 = vst [vmem:[#allocation10 + $0x8] sm:$0xff] %v2170
    // Predicated region
    $region54: #{base_teacher_force_forward.1} parent=1 // pred_check
      _
    $region55: #{base_teacher_force_forward.1} parent=1 // pred_check_branch
      %2174 = sbr.rel (0) target = $region57
    $region56: #{base_teacher_force_forward.1} parent=1 // pred_region
      %2176 = vsyncadd [#allocation4], 0
      %s2177 = sshll.u32 [#allocation10], 4
      %s2178 = int_to_ptr.vmem [resolvable:$true] %s2177
      %s2179 = sshll.u32 %s9, 4
      %s2180 = int_to_ptr.hbm [resolvable:$true] %s2179
      %2185 = dma.vmem_to_hbm [thread:$0]  %s2178, 256, %s2180, [#allocation4], 128, 128, 8
    $region57: #{base_teacher_force_forward.1} parent=1 // pred_fallthru
      _
    // Predicated region
    $region58: #{base_teacher_force_forward.1} parent=1 // pred_check
      _
    $region59: #{base_teacher_force_forward.1} parent=1 // pred_check_branch
      %2187 = sbr.rel (0) target = $region61
    $region60: #{base_teacher_force_forward.1} parent=1 // pred_region
      %2189 = vsyncadd [#allocation12], 0
      %s2190 = sshll.u32 [#allocation11], 4
      %s2191 = int_to_ptr.vmem [resolvable:$true] %s2190
      %s2192 = sshll.u32 %s10, 4
      %s2193 = int_to_ptr.hbm [resolvable:$true] %s2192
      %2198 = dma.vmem_to_hbm [thread:$0]  %s2191, 64, %s2193, [#allocation12], 32, 32, 2
    $region61: #{base_teacher_force_forward.1} parent=1 // pred_fallthru
      _
    // Predicated region
    $region62: #{base_teacher_force_forward.1} parent=1 // pred_check
      _
    $region63: #{base_teacher_force_forward.1} parent=1 // pred_check_branch
      %2200 = sbr.rel (0) target = $region65
    $region64: #{base_teacher_force_forward.1} parent=1 // pred_region
      %2202 = vsyncadd [#allocation12], 0
      %s2203 = sshll.u32 [#allocation13], 4
      %s2204 = int_to_ptr.vmem [resolvable:$true] %s2203
      %s2205 = sshll.u32 %s11, 4
      %s2206 = int_to_ptr.hbm [resolvable:$true] %s2205
      %2211 = dma.vmem_to_hbm [thread:$0]  %s2204, 64, %s2206, [#allocation12], 32, 32, 2
    $region65: #{base_teacher_force_forward.1} parent=1 // pred_fallthru
      _
    // Predicated region
    $region66: #{base_teacher_force_forward.1} parent=1 // pred_check
      _
    $region67: #{base_teacher_force_forward.1} parent=1 // pred_check_branch
      %2213 = sbr.rel (0) target = $region69
    $region68: #{base_teacher_force_forward.1} parent=1 // pred_region
      %2215 = dma.done [#allocation4], 256
    $region69: #{base_teacher_force_forward.1} parent=1 // pred_fallthru
      _
    // Predicated region
    $region70: #{base_teacher_force_forward.1} parent=1 // pred_check
      _
    $region71: #{base_teacher_force_forward.1} parent=1 // pred_check_branch
      %2217 = sbr.rel (0) target = $region73
    $region72: #{base_teacher_force_forward.1} parent=1 // pred_region
      %2219 = dma.done [#allocation12], 64
    $region73: #{base_teacher_force_forward.1} parent=1 // pred_fallthru
      _
    // Predicated region
    $region74: #{base_teacher_force_forward.1} parent=1 // pred_check
      _
    $region75: #{base_teacher_force_forward.1} parent=1 // pred_check_branch
      %2221 = sbr.rel (0) target = $region77
    $region76: #{base_teacher_force_forward.1} parent=1 // pred_region
      %2223 = dma.done [#allocation12], 64
    $region77: #{base_teacher_force_forward.1} parent=1 // pred_fallthru
      _
    %2224 = vsyncpa [#allocation3], 1
    %2225 = vsyncpa [#allocation6], 1
    %2226 = vsyncpa [#allocation9], 1
    %2227 = vsyncpa [#allocation4], 1
    %2228 = vsyncpa [#allocation12], 1

</llo_original>
